<compile_context>
chip_gen: v5e
topology: v5e:2x2
jax: 0.10.0
libtpu: 0.0.40
codegen_flags: <defaults>
</compile_context>

<pallas_src>
import numpy as np
import jax
import jax.numpy as jnp
from jax.experimental import pallas as pl
from jax.experimental.pallas import tpu as pltpu


# ----------------------------------------------------------------------------
# Fused whole-encoder kernel: grid iterates over layers; activations resident.
# ----------------------------------------------------------------------------
def _make_encoder_kernel(B, S, D, H, d_k, d_v, D_h):
    scale = 1.0 / float(np.sqrt(d_k))
    eps = 1e-6
    Hdk = H * d_k
    Hdv = H * d_v
    BS = B * S

    def layer_norm(z, gamma, beta):
        mu = jnp.mean(z, axis=-1, keepdims=True)
        var = jnp.mean(jnp.square(z - mu), axis=-1, keepdims=True)
        return (z - mu) * jax.lax.rsqrt(var + eps) * gamma + beta

    def kernel(x_ref, pos_ref, wqkv_ref, bqkv_ref, wo_ref,
               w1_ref, b1_ref, w2_ref, vecd_ref, out_ref, acc_ref):
        layer = pl.program_id(0)

        # Layer 0: load embeddings, add positional encoding, park in VMEM scratch.
        @pl.when(layer == 0)
        def _():
            x0 = x_ref[...] + pos_ref[...][None, :, :]          # (B, S, D)
            acc_ref[...] = x0.reshape(BS, D)

        x = acc_ref[...]                                        # (B*S, D) resident

        vec = vecd_ref[0]                                       # (6, D)  packed vectors
        bqkv = bqkv_ref[0]                                      # (1, 2*H*dk + H*dv)
        b1 = b1_ref[0]                                          # (1, D_h)

        # ---- fused QKV projection: one MXU matmul ----
        qkv = jnp.dot(x, wqkv_ref[0],
                      preferred_element_type=jnp.float32) + bqkv
        q = qkv[:, :Hdk].reshape(B, S, Hdk)
        k = qkv[:, Hdk:2 * Hdk].reshape(B, S, Hdk)
        v = qkv[:, 2 * Hdk:2 * Hdk + Hdv].reshape(B, S, Hdv)

        # ---- multi-head self-attention (batched over B per head) ----
        heads = []
        for h in range(H):                                      # static unroll, H small
            qh = q[:, :, h * d_k:(h + 1) * d_k]                 # (B, S, d_k)
            kh = k[:, :, h * d_k:(h + 1) * d_k]
            vh = v[:, :, h * d_v:(h + 1) * d_v]
            s = jnp.einsum('bqd,bkd->bqk', qh, kh,
                           preferred_element_type=jnp.float32) * scale
            s = s - jnp.max(s, axis=-1, keepdims=True)
            e = jnp.exp(s)
            p = e * pl.reciprocal(jnp.sum(e, axis=-1, keepdims=True),
                                  approx=True)
            heads.append(jnp.einsum('bqk,bkd->bqd', p, vh,
                                    preferred_element_type=jnp.float32))
        ctx = jnp.concatenate(heads, axis=-1).reshape(BS, Hdv)

        # output projection + residual + LayerNorm 1
        attn = jnp.dot(ctx, wo_ref[0],
                       preferred_element_type=jnp.float32) + vec[0:1]   # bo
        z = layer_norm(attn + x, vec[1:2], vec[2:3])                    # g1, be1

        # position-wise FFN + residual + LayerNorm 2
        h1 = jnp.maximum(
            jnp.dot(z, w1_ref[0], preferred_element_type=jnp.float32) + b1, 0.0)
        o2 = jnp.dot(h1, w2_ref[0],
                     preferred_element_type=jnp.float32) + vec[3:4]     # b2
        y = layer_norm(o2 + z, vec[4:5], vec[5:6])                      # g2, be2

        acc_ref[...] = y                                        # carry to next layer

        @pl.when(layer == pl.num_programs(0) - 1)
        def _():
            out_ref[...] = y.reshape(B, S, D)

    return kernel


def encoder_pallas(x_emb, pos, stacked, n_head, d_k, d_v):
    """x_emb: (B, S, D) embeddings; pos: (S, D); stacked: per-layer weights
    stacked along a leading layer axis."""
    B, S, D = x_emb.shape
    L, _, QKVd = stacked["wqkv"].shape
    D_h = stacked["w1"].shape[2]
    Hdv = n_head * d_v

    kernel = _make_encoder_kernel(B, S, D, n_head, d_k, d_v, D_h)

    in_specs = [
        pl.BlockSpec((B, S, D), lambda l: (0, 0, 0)),          # embeddings (read once)
        pl.BlockSpec((S, D), lambda l: (0, 0)),                # positional table
        pl.BlockSpec((1, D, QKVd), lambda l: (l, 0, 0)),       # fused QKV weight
        pl.BlockSpec((1, 1, QKVd), lambda l: (l, 0, 0)),       # fused QKV bias
        pl.BlockSpec((1, Hdv, D), lambda l: (l, 0, 0)),        # output projection
        pl.BlockSpec((1, D, D_h), lambda l: (l, 0, 0)),        # FFN W1
        pl.BlockSpec((1, 1, D_h), lambda l: (l, 0, 0)),        # FFN b1
        pl.BlockSpec((1, D_h, D), lambda l: (l, 0, 0)),        # FFN W2
        pl.BlockSpec((1, 6, D), lambda l: (l, 0, 0)),          # packed [bo,g1,be1,b2,g2,be2]
    ]

    return pl.pallas_call(
        kernel,
        out_shape=jax.ShapeDtypeStruct((B, S, D), jnp.float32),
        grid=(L,),
        in_specs=in_specs,
        out_specs=pl.BlockSpec((B, S, D), lambda l: (0, 0, 0)),
        scratch_shapes=[pltpu.VMEM((B * S, D), jnp.float32)],
        compiler_params=pltpu.CompilerParams(
            dimension_semantics=("arbitrary",)),
    )(x_emb, pos, stacked["wqkv"], stacked["bqkv"], stacked["wo"],
      stacked["w1"], stacked["b1"], stacked["w2"], stacked["vecd"])


# ----------------------------------------------------------------------------
# Parameter construction (deterministic, PyTorch-shape-compatible) + stacking
# ----------------------------------------------------------------------------
def sinusoid_table(n_position, d_model):
    pos = np.arange(n_position)[:, None].astype(np.float64)
    i = np.arange(d_model)[None, :]
    tbl = pos / np.power(10000.0, (i // 2 * 2) / d_model)
    tbl[:, 0::2] = np.sin(tbl[:, 0::2])
    tbl[:, 1::2] = np.cos(tbl[:, 1::2])
    return jnp.asarray(tbl[None, :, :], dtype=jnp.float32)        # (1, P, D)


def init_params(key, n_vocab, d_model, d_hidden, n_head, d_k, d_v, n_layer):
    keys = jax.random.split(key, 1 + n_layer)
    emb = jax.random.normal(keys[0], (n_vocab, d_model), jnp.float32) * 0.02

    def layer_params(k):
        ks = jax.random.split(k, 6)
        s = 0.02
        return {
            "wq": jax.random.normal(ks[0], (d_model, n_head * d_k), jnp.float32) * s,
            "bq": jnp.zeros((1, n_head * d_k), jnp.float32),
            "wk": jax.random.normal(ks[1], (d_model, n_head * d_k), jnp.float32) * s,
            "bk": jnp.zeros((1, n_head * d_k), jnp.float32),
            "wv": jax.random.normal(ks[2], (d_model, n_head * d_v), jnp.float32) * s,
            "bv": jnp.zeros((1, n_head * d_v), jnp.float32),
            "wo": jax.random.normal(ks[3], (n_head * d_v, d_model), jnp.float32) * s,
            "bo": jnp.zeros((1, d_model), jnp.float32),
            "g1": jnp.ones((1, d_model), jnp.float32),
            "be1": jnp.zeros((1, d_model), jnp.float32),
            "w1": jax.random.normal(ks[4], (d_model, d_hidden), jnp.float32) * s,
            "b1": jnp.zeros((1, d_hidden), jnp.float32),
            "w2": jax.random.normal(ks[5], (d_hidden, d_model), jnp.float32) * s,
            "b2": jnp.zeros((1, d_model), jnp.float32),
            "g2": jnp.ones((1, d_model), jnp.float32),
            "be2": jnp.zeros((1, d_model), jnp.float32),
        }

    layers = [layer_params(keys[1 + i]) for i in range(n_layer)]
    return emb, layers


def stack_layer_params(layers):
    """Fuse QKV weights/biases, pack small vectors, stack along a layer axis."""
    wqkv = jnp.stack([jnp.concatenate([p["wq"], p["wk"], p["wv"]], axis=1)
                      for p in layers])                           # (L, D, 2*H*dk + H*dv)
    bqkv = jnp.stack([jnp.concatenate([p["bq"], p["bk"], p["bv"]], axis=1)
                      for p in layers])                           # (L, 1, ...)
    vecd = jnp.stack([jnp.concatenate([p["bo"], p["g1"], p["be1"],
                                       p["b2"], p["g2"], p["be2"]], axis=0)
                      for p in layers])                           # (L, 6, D)
    return {
        "wqkv": wqkv,
        "bqkv": bqkv,
        "wo": jnp.stack([p["wo"] for p in layers]),
        "w1": jnp.stack([p["w1"] for p in layers]),
        "b1": jnp.stack([p["b1"] for p in layers]),
        "w2": jnp.stack([p["w2"] for p in layers]),
        "vecd": vecd,
    }


# ----------------------------------------------------------------------------
# Full Encoder forward (dropout = identity, src_mask = None)
# ----------------------------------------------------------------------------
def encoder_forward(src_seq, emb, pos_table, stacked, n_head, d_k, d_v):
    B, S = src_seq.shape
    x = jnp.take(emb, src_seq, axis=0)        # embedding gather (JAX glue)
    pos = pos_table[0, :S]                    # (S, D) positional slice
    out = encoder_pallas(x, pos, stacked, n_head, d_k, d_v)
    return out, []                            # return_attns=False -> []


if __name__ == "__main__":
    # small shapes consistent with the module
    B, S = 2, 8
    n_vocab, d_model, d_hidden = 50, 32, 64
    n_head, d_k, d_v = 4, 8, 8
    n_layer, n_position = 2, 100

    key = jax.random.PRNGKey(0)
    k_seq, k_par = jax.random.split(key)
    src_seq = jax.random.randint(k_seq, (B, S), 0, n_vocab, dtype=jnp.int32)

    emb, layers = init_params(k_par, n_vocab, d_model, d_hidden,
                              n_head, d_k, d_v, n_layer)
    stacked = stack_layer_params(layers)
    pos_table = sinusoid_table(n_position, d_model)

    out, _ = encoder_forward(src_seq, emb, pos_table, stacked,
                             n_head, d_k, d_v)
    out = jax.block_until_ready(out)
    assert out.shape == (B, S, d_model)
    assert bool(jnp.all(jnp.isfinite(out)))
    print("KERNEL_OK")
</pallas_src>

<mosaic_0001>
module attributes {stable_mosaic.version = 11 : i64} {
  func.func @kernel(%arg0: i32, %arg1: memref<2x8x32xf32, #tpu.memory_space<vmem>>, %arg2: memref<8x32xf32, #tpu.memory_space<vmem>>, %arg3: memref<1x32x96xf32, #tpu.memory_space<vmem>>, %arg4: memref<1x1x96xf32, #tpu.memory_space<vmem>>, %arg5: memref<1x32x32xf32, #tpu.memory_space<vmem>>, %arg6: memref<1x32x64xf32, #tpu.memory_space<vmem>>, %arg7: memref<1x1x64xf32, #tpu.memory_space<vmem>>, %arg8: memref<1x64x32xf32, #tpu.memory_space<vmem>>, %arg9: memref<1x6x32xf32, #tpu.memory_space<vmem>>, %arg10: memref<2x8x32xf32, #tpu.memory_space<vmem>>, %arg11: memref<16x32xf32, #tpu.memory_space<vmem>>) attributes {dimension_semantics = [#tpu.dimension_semantics<arbitrary>], iteration_bounds = array<i64: 2>, scalar_prefetch = 0 : i64, scratch_operands = 1 : i64, tpu.core_type = #tpu.core_type<tc>, window_params = [{pipeline_mode = #tpu.pipeline_mode<synchronous>, transform_indices = @transform_0, window_bounds = array<i64: 2, 8, 32>}, {pipeline_mode = #tpu.pipeline_mode<synchronous>, transform_indices = @transform_1, window_bounds = array<i64: 8, 32>}, {transform_indices = @transform_2, window_bounds = array<i64: 1, 32, 96>}, {transform_indices = @transform_3, window_bounds = array<i64: 1, 1, 96>}, {transform_indices = @transform_4, window_bounds = array<i64: 1, 32, 32>}, {transform_indices = @transform_5, window_bounds = array<i64: 1, 32, 64>}, {transform_indices = @transform_6, window_bounds = array<i64: 1, 1, 64>}, {transform_indices = @transform_7, window_bounds = array<i64: 1, 64, 32>}, {transform_indices = @transform_8, window_bounds = array<i64: 1, 6, 32>}, {pipeline_mode = #tpu.pipeline_mode<synchronous>, transform_indices = @transform_9, window_bounds = array<i64: 2, 8, 32>}]} {
    %c0_i32 = arith.constant 0 : i32
    %0 = arith.cmpi eq, %arg0, %c0_i32 : i32
    %1 = arith.extui %0 : i1 to i32
    %c0_i32_0 = arith.constant 0 : i32
    %2 = arith.cmpi ne, %1, %c0_i32_0 : i32
    scf.if %2 {
      %c0_60 = arith.constant 0 : index
      %c0_61 = arith.constant 0 : index
      %c0_62 = arith.constant 0 : index
      %164 = vector.load %arg1[%c0_60, %c0_61, %c0_62] : memref<2x8x32xf32, #tpu.memory_space<vmem>>, vector<2x8x32xf32>
      %c0_63 = arith.constant 0 : index
      %c0_64 = arith.constant 0 : index
      %165 = vector.load %arg2[%c0_63, %c0_64] : memref<8x32xf32, #tpu.memory_space<vmem>>, vector<8x32xf32>
      %166 = vector.shape_cast %165 : vector<8x32xf32> to vector<1x8x32xf32>
      %167 = vector.broadcast %166 : vector<1x8x32xf32> to vector<2x8x32xf32>
      %168 = arith.addf %164, %167 : vector<2x8x32xf32>
      %169 = vector.shape_cast %168 : vector<2x8x32xf32> to vector<16x32xf32>
      %c0_65 = arith.constant 0 : index
      %c0_66 = arith.constant 0 : index
      %170 = vector.load %arg11[%c0_65, %c0_66] : memref<16x32xf32, #tpu.memory_space<vmem>>, vector<16x32xf32>
      tpu.vector_store %arg11[%c0_65, %c0_66], %169 {strides = array<i32>} : memref<16x32xf32, #tpu.memory_space<vmem>>, vector<16x32xf32>,
    } else {
    }
    %c0 = arith.constant 0 : index
    %c0_1 = arith.constant 0 : index
    %3 = vector.load %arg11[%c0, %c0_1] : memref<16x32xf32, #tpu.memory_space<vmem>>, vector<16x32xf32>
    %c0_2 = arith.constant 0 : index
    %c0_3 = arith.constant 0 : index
    %c0_4 = arith.constant 0 : index
    %4 = vector.load %arg9[%c0_2, %c0_3, %c0_4] : memref<1x6x32xf32, #tpu.memory_space<vmem>>, vector<1x6x32xf32>
    %5 = vector.shape_cast %4 : vector<1x6x32xf32> to vector<6x32xf32>
    %c0_5 = arith.constant 0 : index
    %c0_6 = arith.constant 0 : index
    %c0_7 = arith.constant 0 : index
    %6 = vector.load %arg4[%c0_5, %c0_6, %c0_7] : memref<1x1x96xf32, #tpu.memory_space<vmem>>, vector<1x1x96xf32>
    %7 = vector.shape_cast %6 : vector<1x1x96xf32> to vector<1x96xf32>
    %c0_8 = arith.constant 0 : index
    %c0_9 = arith.constant 0 : index
    %c0_10 = arith.constant 0 : index
    %8 = vector.load %arg7[%c0_8, %c0_9, %c0_10] : memref<1x1x64xf32, #tpu.memory_space<vmem>>, vector<1x1x64xf32>
    %9 = vector.shape_cast %8 : vector<1x1x64xf32> to vector<1x64xf32>
    %c0_11 = arith.constant 0 : index
    %c0_12 = arith.constant 0 : index
    %c0_13 = arith.constant 0 : index
    %10 = vector.load %arg3[%c0_11, %c0_12, %c0_13] : memref<1x32x96xf32, #tpu.memory_space<vmem>>, vector<1x32x96xf32>
    %11 = vector.shape_cast %10 : vector<1x32x96xf32> to vector<32x96xf32>
    %cst = arith.constant dense<0.000000e+00> : vector<16x96xf32>
    %12 = tpu.matmul %3, %11, %cst {dimension_numbers = #tpu.dot_dimension_numbers<[1], [0], [0], [1], [0, 0, 1, 1], [], []>} : vector<16x32xf32>, vector<32x96xf32>, vector<16x96xf32> -> vector<16x96xf32>
    %13 = vector.broadcast %7 : vector<1x96xf32> to vector<16x96xf32>
    %14 = arith.addf %12, %13 : vector<16x96xf32>
    %15 = vector.extract_strided_slice %14 {offsets = [0, 0], sizes = [16, 32], strides = [1, 1]} : vector<16x96xf32> to vector<16x32xf32>
    %16 = vector.shape_cast %15 : vector<16x32xf32> to vector<2x8x32xf32>
    %17 = vector.extract_strided_slice %14 {offsets = [0, 32], sizes = [16, 32], strides = [1, 1]} : vector<16x96xf32> to vector<16x32xf32>
    %18 = vector.shape_cast %17 : vector<16x32xf32> to vector<2x8x32xf32>
    %19 = vector.extract_strided_slice %14 {offsets = [0, 64], sizes = [16, 32], strides = [1, 1]} : vector<16x96xf32> to vector<16x32xf32>
    %20 = vector.shape_cast %19 : vector<16x32xf32> to vector<2x8x32xf32>
    %21 = vector.extract_strided_slice %16 {offsets = [0, 0, 0], sizes = [2, 8, 8], strides = [1, 1, 1]} : vector<2x8x32xf32> to vector<2x8x8xf32>
    %22 = vector.extract_strided_slice %18 {offsets = [0, 0, 0], sizes = [2, 8, 8], strides = [1, 1, 1]} : vector<2x8x32xf32> to vector<2x8x8xf32>
    %23 = vector.extract_strided_slice %20 {offsets = [0, 0, 0], sizes = [2, 8, 8], strides = [1, 1, 1]} : vector<2x8x32xf32> to vector<2x8x8xf32>
    "tpu.trace_start"() <{level = 10 : i32, message = "bqd,bkd->bqk"}> : () -> ()
    %cst_14 = arith.constant dense<0.000000e+00> : vector<2x8x8xf32>
    %24 = tpu.matmul %21, %22, %cst_14 {dimension_numbers = #tpu.dot_dimension_numbers<[2], [2], [1], [1], [0, 0, 0, 1, 1, 1], [0], [0]>} : vector<2x8x8xf32>, vector<2x8x8xf32>, vector<2x8x8xf32> -> vector<2x8x8xf32>
    "tpu.trace_stop"() : () -> ()
    %cst_15 = arith.constant 0.353553385 : f32
    %25 = vector.broadcast %cst_15 : f32 to vector<2x8x8xf32>
    %26 = arith.mulf %24, %25 : vector<2x8x8xf32>
    %cst_16 = arith.constant dense<0xFF800000> : vector<2x8xf32>
    %27 = vector.multi_reduction <maximumf>, %26, %cst_16 [2] : vector<2x8x8xf32> to vector<2x8xf32>
    %28 = vector.shape_cast %27 : vector<2x8xf32> to vector<2x8x1xf32>
    %29 = vector.broadcast %28 : vector<2x8x1xf32> to vector<2x8x8xf32>
    %30 = arith.subf %26, %29 : vector<2x8x8xf32>
    %31 = math.exp %30 : vector<2x8x8xf32>
    %cst_17 = arith.constant dense<0.000000e+00> : vector<2x8xf32>
    %32 = vector.multi_reduction <add>, %31, %cst_17 [2] : vector<2x8x8xf32> to vector<2x8xf32>
    %33 = vector.shape_cast %32 : vector<2x8xf32> to vector<2x8x1xf32>
    %34 = tpu.reciprocal %33 {approx = true} : vector<2x8x1xf32> -> vector<2x8x1xf32>
    %35 = vector.broadcast %34 : vector<2x8x1xf32> to vector<2x8x8xf32>
    %36 = arith.mulf %31, %35 : vector<2x8x8xf32>
    "tpu.trace_start"() <{level = 10 : i32, message = "bqk,bkd->bqd"}> : () -> ()
    %cst_18 = arith.constant dense<0.000000e+00> : vector<2x8x8xf32>
    %37 = tpu.matmul %36, %23, %cst_18 {dimension_numbers = #tpu.dot_dimension_numbers<[2], [1], [1], [2], [0, 0, 0, 1, 1, 2], [0], [0]>} : vector<2x8x8xf32>, vector<2x8x8xf32>, vector<2x8x8xf32> -> vector<2x8x8xf32>
    "tpu.trace_stop"() : () -> ()
    %38 = vector.extract_strided_slice %16 {offsets = [0, 0, 8], sizes = [2, 8, 8], strides = [1, 1, 1]} : vector<2x8x32xf32> to vector<2x8x8xf32>
    %39 = vector.extract_strided_slice %18 {offsets = [0, 0, 8], sizes = [2, 8, 8], strides = [1, 1, 1]} : vector<2x8x32xf32> to vector<2x8x8xf32>
    %40 = vector.extract_strided_slice %20 {offsets = [0, 0, 8], sizes = [2, 8, 8], strides = [1, 1, 1]} : vector<2x8x32xf32> to vector<2x8x8xf32>
    "tpu.trace_start"() <{level = 10 : i32, message = "bqd,bkd->bqk"}> : () -> ()
    %cst_19 = arith.constant dense<0.000000e+00> : vector<2x8x8xf32>
    %41 = tpu.matmul %38, %39, %cst_19 {dimension_numbers = #tpu.dot_dimension_numbers<[2], [2], [1], [1], [0, 0, 0, 1, 1, 1], [0], [0]>} : vector<2x8x8xf32>, vector<2x8x8xf32>, vector<2x8x8xf32> -> vector<2x8x8xf32>
    "tpu.trace_stop"() : () -> ()
    %cst_20 = arith.constant 0.353553385 : f32
    %42 = vector.broadcast %cst_20 : f32 to vector<2x8x8xf32>
    %43 = arith.mulf %41, %42 : vector<2x8x8xf32>
    %cst_21 = arith.constant dense<0xFF800000> : vector<2x8xf32>
    %44 = vector.multi_reduction <maximumf>, %43, %cst_21 [2] : vector<2x8x8xf32> to vector<2x8xf32>
    %45 = vector.shape_cast %44 : vector<2x8xf32> to vector<2x8x1xf32>
    %46 = vector.broadcast %45 : vector<2x8x1xf32> to vector<2x8x8xf32>
    %47 = arith.subf %43, %46 : vector<2x8x8xf32>
    %48 = math.exp %47 : vector<2x8x8xf32>
    %cst_22 = arith.constant dense<0.000000e+00> : vector<2x8xf32>
    %49 = vector.multi_reduction <add>, %48, %cst_22 [2] : vector<2x8x8xf32> to vector<2x8xf32>
    %50 = vector.shape_cast %49 : vector<2x8xf32> to vector<2x8x1xf32>
    %51 = tpu.reciprocal %50 {approx = true} : vector<2x8x1xf32> -> vector<2x8x1xf32>
    %52 = vector.broadcast %51 : vector<2x8x1xf32> to vector<2x8x8xf32>
    %53 = arith.mulf %48, %52 : vector<2x8x8xf32>
    "tpu.trace_start"() <{level = 10 : i32, message = "bqk,bkd->bqd"}> : () -> ()
    %cst_23 = arith.constant dense<0.000000e+00> : vector<2x8x8xf32>
    %54 = tpu.matmul %53, %40, %cst_23 {dimension_numbers = #tpu.dot_dimension_numbers<[2], [1], [1], [2], [0, 0, 0, 1, 1, 2], [0], [0]>} : vector<2x8x8xf32>, vector<2x8x8xf32>, vector<2x8x8xf32> -> vector<2x8x8xf32>
    "tpu.trace_stop"() : () -> ()
    %55 = vector.extract_strided_slice %16 {offsets = [0, 0, 16], sizes = [2, 8, 8], strides = [1, 1, 1]} : vector<2x8x32xf32> to vector<2x8x8xf32>
    %56 = vector.extract_strided_slice %18 {offsets = [0, 0, 16], sizes = [2, 8, 8], strides = [1, 1, 1]} : vector<2x8x32xf32> to vector<2x8x8xf32>
    %57 = vector.extract_strided_slice %20 {offsets = [0, 0, 16], sizes = [2, 8, 8], strides = [1, 1, 1]} : vector<2x8x32xf32> to vector<2x8x8xf32>
    "tpu.trace_start"() <{level = 10 : i32, message = "bqd,bkd->bqk"}> : () -> ()
    %cst_24 = arith.constant dense<0.000000e+00> : vector<2x8x8xf32>
    %58 = tpu.matmul %55, %56, %cst_24 {dimension_numbers = #tpu.dot_dimension_numbers<[2], [2], [1], [1], [0, 0, 0, 1, 1, 1], [0], [0]>} : vector<2x8x8xf32>, vector<2x8x8xf32>, vector<2x8x8xf32> -> vector<2x8x8xf32>
    "tpu.trace_stop"() : () -> ()
    %cst_25 = arith.constant 0.353553385 : f32
    %59 = vector.broadcast %cst_25 : f32 to vector<2x8x8xf32>
    %60 = arith.mulf %58, %59 : vector<2x8x8xf32>
    %cst_26 = arith.constant dense<0xFF800000> : vector<2x8xf32>
    %61 = vector.multi_reduction <maximumf>, %60, %cst_26 [2] : vector<2x8x8xf32> to vector<2x8xf32>
    %62 = vector.shape_cast %61 : vector<2x8xf32> to vector<2x8x1xf32>
    %63 = vector.broadcast %62 : vector<2x8x1xf32> to vector<2x8x8xf32>
    %64 = arith.subf %60, %63 : vector<2x8x8xf32>
    %65 = math.exp %64 : vector<2x8x8xf32>
    %cst_27 = arith.constant dense<0.000000e+00> : vector<2x8xf32>
    %66 = vector.multi_reduction <add>, %65, %cst_27 [2] : vector<2x8x8xf32> to vector<2x8xf32>
    %67 = vector.shape_cast %66 : vector<2x8xf32> to vector<2x8x1xf32>
    %68 = tpu.reciprocal %67 {approx = true} : vector<2x8x1xf32> -> vector<2x8x1xf32>
    %69 = vector.broadcast %68 : vector<2x8x1xf32> to vector<2x8x8xf32>
    %70 = arith.mulf %65, %69 : vector<2x8x8xf32>
    "tpu.trace_start"() <{level = 10 : i32, message = "bqk,bkd->bqd"}> : () -> ()
    %cst_28 = arith.constant dense<0.000000e+00> : vector<2x8x8xf32>
    %71 = tpu.matmul %70, %57, %cst_28 {dimension_numbers = #tpu.dot_dimension_numbers<[2], [1], [1], [2], [0, 0, 0, 1, 1, 2], [0], [0]>} : vector<2x8x8xf32>, vector<2x8x8xf32>, vector<2x8x8xf32> -> vector<2x8x8xf32>
    "tpu.trace_stop"() : () -> ()
    %72 = vector.extract_strided_slice %16 {offsets = [0, 0, 24], sizes = [2, 8, 8], strides = [1, 1, 1]} : vector<2x8x32xf32> to vector<2x8x8xf32>
    %73 = vector.extract_strided_slice %18 {offsets = [0, 0, 24], sizes = [2, 8, 8], strides = [1, 1, 1]} : vector<2x8x32xf32> to vector<2x8x8xf32>
    %74 = vector.extract_strided_slice %20 {offsets = [0, 0, 24], sizes = [2, 8, 8], strides = [1, 1, 1]} : vector<2x8x32xf32> to vector<2x8x8xf32>
    "tpu.trace_start"() <{level = 10 : i32, message = "bqd,bkd->bqk"}> : () -> ()
    %cst_29 = arith.constant dense<0.000000e+00> : vector<2x8x8xf32>
    %75 = tpu.matmul %72, %73, %cst_29 {dimension_numbers = #tpu.dot_dimension_numbers<[2], [2], [1], [1], [0, 0, 0, 1, 1, 1], [0], [0]>} : vector<2x8x8xf32>, vector<2x8x8xf32>, vector<2x8x8xf32> -> vector<2x8x8xf32>
    "tpu.trace_stop"() : () -> ()
    %cst_30 = arith.constant 0.353553385 : f32
    %76 = vector.broadcast %cst_30 : f32 to vector<2x8x8xf32>
    %77 = arith.mulf %75, %76 : vector<2x8x8xf32>
    %cst_31 = arith.constant dense<0xFF800000> : vector<2x8xf32>
    %78 = vector.multi_reduction <maximumf>, %77, %cst_31 [2] : vector<2x8x8xf32> to vector<2x8xf32>
    %79 = vector.shape_cast %78 : vector<2x8xf32> to vector<2x8x1xf32>
    %80 = vector.broadcast %79 : vector<2x8x1xf32> to vector<2x8x8xf32>
    %81 = arith.subf %77, %80 : vector<2x8x8xf32>
    %82 = math.exp %81 : vector<2x8x8xf32>
    %cst_32 = arith.constant dense<0.000000e+00> : vector<2x8xf32>
    %83 = vector.multi_reduction <add>, %82, %cst_32 [2] : vector<2x8x8xf32> to vector<2x8xf32>
    %84 = vector.shape_cast %83 : vector<2x8xf32> to vector<2x8x1xf32>
    %85 = tpu.reciprocal %84 {approx = true} : vector<2x8x1xf32> -> vector<2x8x1xf32>
    %86 = vector.broadcast %85 : vector<2x8x1xf32> to vector<2x8x8xf32>
    %87 = arith.mulf %82, %86 : vector<2x8x8xf32>
    "tpu.trace_start"() <{level = 10 : i32, message = "bqk,bkd->bqd"}> : () -> ()
    %cst_33 = arith.constant dense<0.000000e+00> : vector<2x8x8xf32>
    %88 = tpu.matmul %87, %74, %cst_33 {dimension_numbers = #tpu.dot_dimension_numbers<[2], [1], [1], [2], [0, 0, 0, 1, 1, 2], [0], [0]>} : vector<2x8x8xf32>, vector<2x8x8xf32>, vector<2x8x8xf32> -> vector<2x8x8xf32>
    "tpu.trace_stop"() : () -> ()
    %89 = tpu.concatenate %37, %54, %71, %88 in 2 : vector<2x8x8xf32>, vector<2x8x8xf32>, vector<2x8x8xf32>, vector<2x8x8xf32> -> vector<2x8x32xf32>
    %90 = vector.shape_cast %89 : vector<2x8x32xf32> to vector<16x32xf32>
    %c0_34 = arith.constant 0 : index
    %c0_35 = arith.constant 0 : index
    %c0_36 = arith.constant 0 : index
    %91 = vector.load %arg5[%c0_34, %c0_35, %c0_36] : memref<1x32x32xf32, #tpu.memory_space<vmem>>, vector<1x32x32xf32>
    %92 = vector.shape_cast %91 : vector<1x32x32xf32> to vector<32x32xf32>
    %cst_37 = arith.constant dense<0.000000e+00> : vector<16x32xf32>
    %93 = tpu.matmul %90, %92, %cst_37 {dimension_numbers = #tpu.dot_dimension_numbers<[1], [0], [0], [1], [0, 0, 1, 1], [], []>} : vector<16x32xf32>, vector<32x32xf32>, vector<16x32xf32> -> vector<16x32xf32>
    %94 = vector.extract_strided_slice %5 {offsets = [0, 0], sizes = [1, 32], strides = [1, 1]} : vector<6x32xf32> to vector<1x32xf32>
    %95 = vector.broadcast %94 : vector<1x32xf32> to vector<16x32xf32>
    %96 = arith.addf %93, %95 : vector<16x32xf32>
    %97 = arith.addf %96, %3 : vector<16x32xf32>
    %98 = vector.extract_strided_slice %5 {offsets = [1, 0], sizes = [1, 32], strides = [1, 1]} : vector<6x32xf32> to vector<1x32xf32>
    %99 = vector.extract_strided_slice %5 {offsets = [2, 0], sizes = [1, 32], strides = [1, 1]} : vector<6x32xf32> to vector<1x32xf32>
    %cst_38 = arith.constant dense<0.000000e+00> : vector<16xf32>
    %100 = vector.multi_reduction <add>, %97, %cst_38 [1] : vector<16x32xf32> to vector<16xf32>
    %101 = vector.shape_cast %100 : vector<16xf32> to vector<16x1xf32>
    %cst_39 = arith.constant 3.200000e+01 : f32
    %102 = vector.broadcast %cst_39 : f32 to vector<16x1xf32>
    %103 = arith.divf %101, %102 : vector<16x1xf32>
    %104 = vector.broadcast %103 : vector<16x1xf32> to vector<16x32xf32>
    %105 = arith.subf %97, %104 : vector<16x32xf32>
    %106 = arith.mulf %105, %105 : vector<16x32xf32>
    %cst_40 = arith.constant dense<0.000000e+00> : vector<16xf32>
    %107 = vector.multi_reduction <add>, %106, %cst_40 [1] : vector<16x32xf32> to vector<16xf32>
    %108 = vector.shape_cast %107 : vector<16xf32> to vector<16x1xf32>
    %cst_41 = arith.constant 3.200000e+01 : f32
    %109 = vector.broadcast %cst_41 : f32 to vector<16x1xf32>
    %110 = arith.divf %108, %109 : vector<16x1xf32>
    %111 = vector.broadcast %103 : vector<16x1xf32> to vector<16x32xf32>
    %112 = arith.subf %97, %111 : vector<16x32xf32>
    %cst_42 = arith.constant 9.99999997E-7 : f32
    %113 = vector.broadcast %cst_42 : f32 to vector<16x1xf32>
    %114 = arith.addf %110, %113 : vector<16x1xf32>
    %115 = math.rsqrt %114 : vector<16x1xf32>
    %116 = vector.broadcast %115 : vector<16x1xf32> to vector<16x32xf32>
    %117 = arith.mulf %112, %116 : vector<16x32xf32>
    %118 = vector.broadcast %98 : vector<1x32xf32> to vector<16x32xf32>
    %119 = arith.mulf %117, %118 : vector<16x32xf32>
    %120 = vector.broadcast %99 : vector<1x32xf32> to vector<16x32xf32>
    %121 = arith.addf %119, %120 : vector<16x32xf32>
    %c0_43 = arith.constant 0 : index
    %c0_44 = arith.constant 0 : index
    %c0_45 = arith.constant 0 : index
    %122 = vector.load %arg6[%c0_43, %c0_44, %c0_45] : memref<1x32x64xf32, #tpu.memory_space<vmem>>, vector<1x32x64xf32>
    %123 = vector.shape_cast %122 : vector<1x32x64xf32> to vector<32x64xf32>
    %cst_46 = arith.constant dense<0.000000e+00> : vector<16x64xf32>
    %124 = tpu.matmul %121, %123, %cst_46 {dimension_numbers = #tpu.dot_dimension_numbers<[1], [0], [0], [1], [0, 0, 1, 1], [], []>} : vector<16x32xf32>, vector<32x64xf32>, vector<16x64xf32> -> vector<16x64xf32>
    %125 = vector.broadcast %9 : vector<1x64xf32> to vector<16x64xf32>
    %126 = arith.addf %124, %125 : vector<16x64xf32>
    %cst_47 = arith.constant 0.000000e+00 : f32
    %127 = vector.broadcast %cst_47 : f32 to vector<16x64xf32>
    %128 = arith.maximumf %126, %127 : vector<16x64xf32>
    %c0_48 = arith.constant 0 : index
    %c0_49 = arith.constant 0 : index
    %c0_50 = arith.constant 0 : index
    %129 = vector.load %arg8[%c0_48, %c0_49, %c0_50] : memref<1x64x32xf32, #tpu.memory_space<vmem>>, vector<1x64x32xf32>
    %130 = vector.shape_cast %129 : vector<1x64x32xf32> to vector<64x32xf32>
    %cst_51 = arith.constant dense<0.000000e+00> : vector<16x32xf32>
    %131 = tpu.matmul %128, %130, %cst_51 {dimension_numbers = #tpu.dot_dimension_numbers<[1], [0], [0], [1], [0, 0, 1, 1], [], []>} : vector<16x64xf32>, vector<64x32xf32>, vector<16x32xf32> -> vector<16x32xf32>
    %132 = vector.extract_strided_slice %5 {offsets = [3, 0], sizes = [1, 32], strides = [1, 1]} : vector<6x32xf32> to vector<1x32xf32>
    %133 = vector.broadcast %132 : vector<1x32xf32> to vector<16x32xf32>
    %134 = arith.addf %131, %133 : vector<16x32xf32>
    %135 = arith.addf %134, %121 : vector<16x32xf32>
    %136 = vector.extract_strided_slice %5 {offsets = [4, 0], sizes = [1, 32], strides = [1, 1]} : vector<6x32xf32> to vector<1x32xf32>
    %137 = vector.extract_strided_slice %5 {offsets = [5, 0], sizes = [1, 32], strides = [1, 1]} : vector<6x32xf32> to vector<1x32xf32>
    %cst_52 = arith.constant dense<0.000000e+00> : vector<16xf32>
    %138 = vector.multi_reduction <add>, %135, %cst_52 [1] : vector<16x32xf32> to vector<16xf32>
    %139 = vector.shape_cast %138 : vector<16xf32> to vector<16x1xf32>
    %cst_53 = arith.constant 3.200000e+01 : f32
    %140 = vector.broadcast %cst_53 : f32 to vector<16x1xf32>
    %141 = arith.divf %139, %140 : vector<16x1xf32>
    %142 = vector.broadcast %141 : vector<16x1xf32> to vector<16x32xf32>
    %143 = arith.subf %135, %142 : vector<16x32xf32>
    %144 = arith.mulf %143, %143 : vector<16x32xf32>
    %cst_54 = arith.constant dense<0.000000e+00> : vector<16xf32>
    %145 = vector.multi_reduction <add>, %144, %cst_54 [1] : vector<16x32xf32> to vector<16xf32>
    %146 = vector.shape_cast %145 : vector<16xf32> to vector<16x1xf32>
    %cst_55 = arith.constant 3.200000e+01 : f32
    %147 = vector.broadcast %cst_55 : f32 to vector<16x1xf32>
    %148 = arith.divf %146, %147 : vector<16x1xf32>
    %149 = vector.broadcast %141 : vector<16x1xf32> to vector<16x32xf32>
    %150 = arith.subf %135, %149 : vector<16x32xf32>
    %cst_56 = arith.constant 9.99999997E-7 : f32
    %151 = vector.broadcast %cst_56 : f32 to vector<16x1xf32>
    %152 = arith.addf %148, %151 : vector<16x1xf32>
    %153 = math.rsqrt %152 : vector<16x1xf32>
    %154 = vector.broadcast %153 : vector<16x1xf32> to vector<16x32xf32>
    %155 = arith.mulf %150, %154 : vector<16x32xf32>
    %156 = vector.broadcast %136 : vector<1x32xf32> to vector<16x32xf32>
    %157 = arith.mulf %155, %156 : vector<16x32xf32>
    %158 = vector.broadcast %137 : vector<1x32xf32> to vector<16x32xf32>
    %159 = arith.addf %157, %158 : vector<16x32xf32>
    %c0_57 = arith.constant 0 : index
    %c0_58 = arith.constant 0 : index
    %160 = vector.load %arg11[%c0_57, %c0_58] : memref<16x32xf32, #tpu.memory_space<vmem>>, vector<16x32xf32>
    tpu.vector_store %arg11[%c0_57, %c0_58], %159 {strides = array<i32>} : memref<16x32xf32, #tpu.memory_space<vmem>>, vector<16x32xf32>,
    %c1_i32 = arith.constant 1 : i32
    %161 = arith.cmpi eq, %arg0, %c1_i32 : i32
    %162 = arith.extui %161 : i1 to i32
    %c0_i32_59 = arith.constant 0 : i32
    %163 = arith.cmpi ne, %162, %c0_i32_59 : i32
    scf.if %163 {
      %164 = vector.shape_cast %159 : vector<16x32xf32> to vector<2x8x32xf32>
      %c0_60 = arith.constant 0 : index
      %c0_61 = arith.constant 0 : index
      %c0_62 = arith.constant 0 : index
      %165 = vector.load %arg10[%c0_60, %c0_61, %c0_62] : memref<2x8x32xf32, #tpu.memory_space<vmem>>, vector<2x8x32xf32>
      tpu.vector_store %arg10[%c0_60, %c0_61, %c0_62], %164 {strides = array<i32>} : memref<2x8x32xf32, #tpu.memory_space<vmem>>, vector<2x8x32xf32>,
    } else {
    }
    return
  }
  func.func @transform_0(%arg0: i32) -> (i32, i32, i32) {
    %c0_i32 = arith.constant 0 : i32
    %c0_i32_0 = arith.constant 0 : i32
    %c0_i32_1 = arith.constant 0 : i32
    %c0_i32_2 = arith.constant 0 : i32
    return %c0_i32, %c0_i32_0, %c0_i32_1 : i32, i32, i32
  }
  func.func @transform_1(%arg0: i32) -> (i32, i32) {
    %c0_i32 = arith.constant 0 : i32
    %c0_i32_0 = arith.constant 0 : i32
    %c0_i32_1 = arith.constant 0 : i32
    return %c0_i32, %c0_i32_0 : i32, i32
  }
  func.func @transform_2(%arg0: i32) -> (i32, i32, i32) {
    %c0_i32 = arith.constant 0 : i32
    %c0_i32_0 = arith.constant 0 : i32
    %c0_i32_1 = arith.constant 0 : i32
    return %arg0, %c0_i32, %c0_i32_0 : i32, i32, i32
  }
  func.func @transform_3(%arg0: i32) -> (i32, i32, i32) {
    %c0_i32 = arith.constant 0 : i32
    %c0_i32_0 = arith.constant 0 : i32
    %c0_i32_1 = arith.constant 0 : i32
    return %arg0, %c0_i32, %c0_i32_0 : i32, i32, i32
  }
  func.func @transform_4(%arg0: i32) -> (i32, i32, i32) {
    %c0_i32 = arith.constant 0 : i32
    %c0_i32_0 = arith.constant 0 : i32
    %c0_i32_1 = arith.constant 0 : i32
    return %arg0, %c0_i32, %c0_i32_0 : i32, i32, i32
  }
  func.func @transform_5(%arg0: i32) -> (i32, i32, i32) {
    %c0_i32 = arith.constant 0 : i32
    %c0_i32_0 = arith.constant 0 : i32
    %c0_i32_1 = arith.constant 0 : i32
    return %arg0, %c0_i32, %c0_i32_0 : i32, i32, i32
  }
  func.func @transform_6(%arg0: i32) -> (i32, i32, i32) {
    %c0_i32 = arith.constant 0 : i32
    %c0_i32_0 = arith.constant 0 : i32
    %c0_i32_1 = arith.constant 0 : i32
    return %arg0, %c0_i32, %c0_i32_0 : i32, i32, i32
  }
  func.func @transform_7(%arg0: i32) -> (i32, i32, i32) {
    %c0_i32 = arith.constant 0 : i32
    %c0_i32_0 = arith.constant 0 : i32
    %c0_i32_1 = arith.constant 0 : i32
    return %arg0, %c0_i32, %c0_i32_0 : i32, i32, i32
  }
  func.func @transform_8(%arg0: i32) -> (i32, i32, i32) {
    %c0_i32 = arith.constant 0 : i32
    %c0_i32_0 = arith.constant 0 : i32
    %c0_i32_1 = arith.constant 0 : i32
    return %arg0, %c0_i32, %c0_i32_0 : i32, i32, i32
  }
  func.func @transform_9(%arg0: i32) -> (i32, i32, i32) {
    %c0_i32 = arith.constant 0 : i32
    %c0_i32_0 = arith.constant 0 : i32
    %c0_i32_1 = arith.constant 0 : i32
    %c0_i32_2 = arith.constant 0 : i32
    return %c0_i32, %c0_i32_0, %c0_i32_1 : i32, i32, i32
  }
}

</mosaic_0001>

<llo_original>
// kernel: tpu_custom_call.1
$region0: #{tpu_custom_call.1}
  #allocation0 [shape = 'u32[]', space=smem, size = 0x4, offset = 0x4, fixed_abs, tag = 'smem constant byte address 0x4 - core index']
  #allocation1 [shape = 'u32[72,128]{1,0:T(1,128)}', space=vmem, size = 0x9000, scoped, tag = 'internal scratch']
  #allocation2 [shape = 'f32[16,32]{1,0:T(8,128)}', space=vmem, size = 0x2000, scoped, tag = 'scratch operand']
  %s0 = inlined_call_operand.vmem [shape: f32[2,8,32], index: 0, kind: input, shape index: {}]
  %s1 = inlined_call_operand.vmem [shape: f32[8,32], index: 1, kind: input, shape index: {}]
  %s2 = inlined_call_operand.vmem [shape: f32[2,32,96], index: 2, kind: input, shape index: {}]
  %s3 = inlined_call_operand.vmem [shape: f32[2,1,96], index: 3, kind: input, shape index: {}]
  %s4 = inlined_call_operand.vmem [shape: f32[2,32,32], index: 4, kind: input, shape index: {}]
  %s5 = inlined_call_operand.vmem [shape: f32[2,32,64], index: 5, kind: input, shape index: {}]
  %s6 = inlined_call_operand.vmem [shape: f32[2,1,64], index: 6, kind: input, shape index: {}]
  %s7 = inlined_call_operand.vmem [shape: f32[2,64,32], index: 7, kind: input, shape index: {}]
  %s8 = inlined_call_operand.vmem [shape: f32[2,6,32], index: 8, kind: input, shape index: {}]
  %s9 = inlined_call_operand.hbm [shape: f32[2,8,32], index: 9, kind: output, shape index: {}]
  %s10 = sld [smem:[#allocation0]]
  $region77: #{tpu_custom_call.1} parent=0
    _
  %s12 = ssub.s32 1, %s10
  %s13 = scalar_select 0, %s12, %s10
  $region1: #{tpu_custom_call.1} parent=0
    #allocation3 [shape = 'u8[8192]{0}', space=vmem, size = 0x2000, scoped, tag = 'output window, operand 0, single buffered']
    #allocation4 [shape = 's32[2]{0}', space=sflag, size = 0x8, scoped, tag = 'scoped memory for tpu_custom_call.1']
    %14 = vsyncpa [#allocation4], 0
    loop: start=0, step=1, limit=4
    $region2: #{tpu_custom_call.1} parent=1 // loop_pre_header
      _
    $region3: #{tpu_custom_call.1} parent=1 // loop_header
      %s16 = sphi 0, %s20
      %p17 = scmp.ge.s32.totalorder %s16, 4
      %s24 = sphi 0, %s24
      %s26 = sphi 0, %s24
      %s27 = sphi 0, %s26
      %s41 = sphi 0, %s27
      %s45 = sphi 0, %s45
      %s47 = sphi 0, %s45
      %s48 = sphi 0, %s47
      %s62 = sphi 0, %s48
      %s68 = sphi 0, %s70
      %s71 = sphi 0, %s68
      %s72 = sphi 0, %s71
      %s88 = sphi 0, %s72
      %s94 = sphi 0, %s96
      %s97 = sphi 0, %s94
      %s98 = sphi 0, %s97
      %s114 = sphi 0, %s98
      %s120 = sphi 0, %s122
      %s123 = sphi 0, %s120
      %s124 = sphi 0, %s123
      %s140 = sphi 0, %s124
      %s146 = sphi 0, %s148
      %s149 = sphi 0, %s146
      %s150 = sphi 0, %s149
      %s166 = sphi 0, %s150
      %s172 = sphi 0, %s174
      %s175 = sphi 0, %s172
      %s176 = sphi 0, %s175
      %s192 = sphi 0, %s176
      %s198 = sphi 0, %s200
      %s201 = sphi 0, %s198
      %s202 = sphi 0, %s201
      %s218 = sphi 0, %s202
      %s224 = sphi 0, %s226
      %s227 = sphi 0, %s224
      %s228 = sphi 0, %s227
      %s244 = sphi 0, %s228
      %s248 = sphi 0, %s248
      %s250 = sphi 0, %s248
      %s251 = sphi 0, %s250
      %s265 = sphi 0, %s251
    $region4: #{tpu_custom_call.1} parent=1 // loop_header_branch
      %19 = sbr.rel (%p17) target = $region8
    $region5: #{tpu_custom_call.1} parent=1 // loop_body
      %s21 = ssub.s32 %s16, 1
      %s22 = ssub.s32 %s16, 2
      %s23 = sadd.s32 %s16, 1
      %s25 = sadd.s32 %s24, 1
      %p28 = scmp.eq.s32.totalorder %s16, 1
      %p29 = scmp.ne.s32.totalorder %s24, %s26
      %p30 = scmp.eq.s32.totalorder %s16, 0
      %p31 = por %p29, %p30
      %p32 = scmp.ne.s32.totalorder %s24, %s26
      %p33 = scmp.eq.s32.totalorder %s21, 1
      %p34 = por %p32, %p33
      %p35 = scmp.ne.s32.totalorder %s26, %s27
      %p36 = scmp.eq.s32.totalorder %s21, 0
      %p37 = por %p35, %p36
      %p38 = scmp.ne.s32.totalorder %s26, %s27
      %p39 = scmp.eq.s32.totalorder %s22, 1
      %p40 = por %p38, %p39
      %p42 = scmp.ne.s32.totalorder %s27, %s41
      %p43 = scmp.eq.s32.totalorder %s22, 0
      %p44 = por %p42, %p43
      %s46 = sadd.s32 %s45, 1
      %p49 = scmp.eq.s32.totalorder %s16, 1
      %p50 = scmp.ne.s32.totalorder %s45, %s47
      %p51 = scmp.eq.s32.totalorder %s16, 0
      %p52 = por %p50, %p51
      %p53 = scmp.ne.s32.totalorder %s45, %s47
      %p54 = scmp.eq.s32.totalorder %s21, 1
      %p55 = por %p53, %p54
      %p56 = scmp.ne.s32.totalorder %s47, %s48
      %p57 = scmp.eq.s32.totalorder %s21, 0
      %p58 = por %p56, %p57
      %p59 = scmp.ne.s32.totalorder %s47, %s48
      %p60 = scmp.eq.s32.totalorder %s22, 1
      %p61 = por %p59, %p60
      %p63 = scmp.ne.s32.totalorder %s48, %s62
      %p64 = scmp.eq.s32.totalorder %s22, 0
      %p65 = por %p63, %p64
      %s66 = ssub.s32 %s16, %s23
      %p67 = scmp.eq.s32.totalorder %s66, 0
      %s69 = sadd.s32 %s68, 1
      %s70 = scalar_select %p67, %s68, %s69
      %p73 = pneg %p67
      %p74 = scmp.eq.s32.totalorder %s16, 1
      %p75 = por %p73, %p74
      %p76 = scmp.ne.s32.totalorder %s68, %s71
      %p77 = scmp.eq.s32.totalorder %s16, 0
      %p78 = por %p76, %p77
      %p79 = scmp.ne.s32.totalorder %s68, %s71
      %p80 = scmp.eq.s32.totalorder %s21, 1
      %p81 = por %p79, %p80
      %p82 = scmp.ne.s32.totalorder %s71, %s72
      %p83 = scmp.eq.s32.totalorder %s21, 0
      %p84 = por %p82, %p83
      %p85 = scmp.ne.s32.totalorder %s71, %s72
      %p86 = scmp.eq.s32.totalorder %s22, 1
      %p87 = por %p85, %p86
      %p89 = scmp.ne.s32.totalorder %s72, %s88
      %p90 = scmp.eq.s32.totalorder %s22, 0
      %p91 = por %p89, %p90
      %s92 = ssub.s32 %s16, %s23
      %p93 = scmp.eq.s32.totalorder %s92, 0
      %s95 = sadd.s32 %s94, 1
      %s96 = scalar_select %p93, %s94, %s95
      %p99 = pneg %p93
      %p100 = scmp.eq.s32.totalorder %s16, 1
      %p101 = por %p99, %p100
      %p102 = scmp.ne.s32.totalorder %s94, %s97
      %p103 = scmp.eq.s32.totalorder %s16, 0
      %p104 = por %p102, %p103
      %p105 = scmp.ne.s32.totalorder %s94, %s97
      %p106 = scmp.eq.s32.totalorder %s21, 1
      %p107 = por %p105, %p106
      %p108 = scmp.ne.s32.totalorder %s97, %s98
      %p109 = scmp.eq.s32.totalorder %s21, 0
      %p110 = por %p108, %p109
      %p111 = scmp.ne.s32.totalorder %s97, %s98
      %p112 = scmp.eq.s32.totalorder %s22, 1
      %p113 = por %p111, %p112
      %p115 = scmp.ne.s32.totalorder %s98, %s114
      %p116 = scmp.eq.s32.totalorder %s22, 0
      %p117 = por %p115, %p116
      %s118 = ssub.s32 %s16, %s23
      %p119 = scmp.eq.s32.totalorder %s118, 0
      %s121 = sadd.s32 %s120, 1
      %s122 = scalar_select %p119, %s120, %s121
      %p125 = pneg %p119
      %p126 = scmp.eq.s32.totalorder %s16, 1
      %p127 = por %p125, %p126
      %p128 = scmp.ne.s32.totalorder %s120, %s123
      %p129 = scmp.eq.s32.totalorder %s16, 0
      %p130 = por %p128, %p129
      %p131 = scmp.ne.s32.totalorder %s120, %s123
      %p132 = scmp.eq.s32.totalorder %s21, 1
      %p133 = por %p131, %p132
      %p134 = scmp.ne.s32.totalorder %s123, %s124
      %p135 = scmp.eq.s32.totalorder %s21, 0
      %p136 = por %p134, %p135
      %p137 = scmp.ne.s32.totalorder %s123, %s124
      %p138 = scmp.eq.s32.totalorder %s22, 1
      %p139 = por %p137, %p138
      %p141 = scmp.ne.s32.totalorder %s124, %s140
      %p142 = scmp.eq.s32.totalorder %s22, 0
      %p143 = por %p141, %p142
      %s144 = ssub.s32 %s16, %s23
      %p145 = scmp.eq.s32.totalorder %s144, 0
      %s147 = sadd.s32 %s146, 1
      %s148 = scalar_select %p145, %s146, %s147
      %p151 = pneg %p145
      %p152 = scmp.eq.s32.totalorder %s16, 1
      %p153 = por %p151, %p152
      %p154 = scmp.ne.s32.totalorder %s146, %s149
      %p155 = scmp.eq.s32.totalorder %s16, 0
      %p156 = por %p154, %p155
      %p157 = scmp.ne.s32.totalorder %s146, %s149
      %p158 = scmp.eq.s32.totalorder %s21, 1
      %p159 = por %p157, %p158
      %p160 = scmp.ne.s32.totalorder %s149, %s150
      %p161 = scmp.eq.s32.totalorder %s21, 0
      %p162 = por %p160, %p161
      %p163 = scmp.ne.s32.totalorder %s149, %s150
      %p164 = scmp.eq.s32.totalorder %s22, 1
      %p165 = por %p163, %p164
      %p167 = scmp.ne.s32.totalorder %s150, %s166
      %p168 = scmp.eq.s32.totalorder %s22, 0
      %p169 = por %p167, %p168
      %s170 = ssub.s32 %s16, %s23
      %p171 = scmp.eq.s32.totalorder %s170, 0
      %s173 = sadd.s32 %s172, 1
      %s174 = scalar_select %p171, %s172, %s173
      %p177 = pneg %p171
      %p178 = scmp.eq.s32.totalorder %s16, 1
      %p179 = por %p177, %p178
      %p180 = scmp.ne.s32.totalorder %s172, %s175
      %p181 = scmp.eq.s32.totalorder %s16, 0
      %p182 = por %p180, %p181
      %p183 = scmp.ne.s32.totalorder %s172, %s175
      %p184 = scmp.eq.s32.totalorder %s21, 1
      %p185 = por %p183, %p184
      %p186 = scmp.ne.s32.totalorder %s175, %s176
      %p187 = scmp.eq.s32.totalorder %s21, 0
      %p188 = por %p186, %p187
      %p189 = scmp.ne.s32.totalorder %s175, %s176
      %p190 = scmp.eq.s32.totalorder %s22, 1
      %p191 = por %p189, %p190
      %p193 = scmp.ne.s32.totalorder %s176, %s192
      %p194 = scmp.eq.s32.totalorder %s22, 0
      %p195 = por %p193, %p194
      %s196 = ssub.s32 %s16, %s23
      %p197 = scmp.eq.s32.totalorder %s196, 0
      %s199 = sadd.s32 %s198, 1
      %s200 = scalar_select %p197, %s198, %s199
      %p203 = pneg %p197
      %p204 = scmp.eq.s32.totalorder %s16, 1
      %p205 = por %p203, %p204
      %p206 = scmp.ne.s32.totalorder %s198, %s201
      %p207 = scmp.eq.s32.totalorder %s16, 0
      %p208 = por %p206, %p207
      %p209 = scmp.ne.s32.totalorder %s198, %s201
      %p210 = scmp.eq.s32.totalorder %s21, 1
      %p211 = por %p209, %p210
      %p212 = scmp.ne.s32.totalorder %s201, %s202
      %p213 = scmp.eq.s32.totalorder %s21, 0
      %p214 = por %p212, %p213
      %p215 = scmp.ne.s32.totalorder %s201, %s202
      %p216 = scmp.eq.s32.totalorder %s22, 1
      %p217 = por %p215, %p216
      %p219 = scmp.ne.s32.totalorder %s202, %s218
      %p220 = scmp.eq.s32.totalorder %s22, 0
      %p221 = por %p219, %p220
      %s222 = ssub.s32 %s16, %s23
      %p223 = scmp.eq.s32.totalorder %s222, 0
      %s225 = sadd.s32 %s224, 1
      %s226 = scalar_select %p223, %s224, %s225
      %p229 = pneg %p223
      %p230 = scmp.eq.s32.totalorder %s16, 1
      %p231 = por %p229, %p230
      %p232 = scmp.ne.s32.totalorder %s224, %s227
      %p233 = scmp.eq.s32.totalorder %s16, 0
      %p234 = por %p232, %p233
      %p235 = scmp.ne.s32.totalorder %s224, %s227
      %p236 = scmp.eq.s32.totalorder %s21, 1
      %p237 = por %p235, %p236
      %p238 = scmp.ne.s32.totalorder %s227, %s228
      %p239 = scmp.eq.s32.totalorder %s21, 0
      %p240 = por %p238, %p239
      %p241 = scmp.ne.s32.totalorder %s227, %s228
      %p242 = scmp.eq.s32.totalorder %s22, 1
      %p243 = por %p241, %p242
      %p245 = scmp.ne.s32.totalorder %s228, %s244
      %p246 = scmp.eq.s32.totalorder %s22, 0
      %p247 = por %p245, %p246
      %s249 = sadd.s32 %s248, 1
      %p252 = scmp.eq.s32.totalorder %s16, 1
      %p253 = scmp.ne.s32.totalorder %s248, %s250
      %p254 = scmp.eq.s32.totalorder %s16, 0
      %p255 = por %p253, %p254
      %p256 = scmp.ne.s32.totalorder %s248, %s250
      %p257 = scmp.eq.s32.totalorder %s21, 1
      %p258 = por %p256, %p257
      %p259 = scmp.ne.s32.totalorder %s250, %s251
      %p260 = scmp.eq.s32.totalorder %s21, 0
      %p261 = por %p259, %p260
      %p262 = scmp.ne.s32.totalorder %s250, %s251
      %p263 = scmp.eq.s32.totalorder %s22, 1
      %p264 = por %p262, %p263
      %p266 = scmp.ne.s32.totalorder %s251, %s265
      %p267 = scmp.eq.s32.totalorder %s22, 0
      %p268 = por %p266, %p267
      %p269 = scmp.le.s32.totalorder 1, %s16
      %p270 = scmp.lt.s32.totalorder %s16, 3
      %p271 = pnand %p269, %p270
      %p272 = pneg %p271
      // Predicated region
      $region9: #{tpu_custom_call.1} parent=5 // pred_check
        _
      $region10: #{tpu_custom_call.1} parent=5 // pred_check_branch
        %274 = sbr.rel (%p271) target = $region12
      $region11: #{tpu_custom_call.1} parent=5 // pred_region
        %s275 = ssub.s32 %s16, 1
        // Predicated region
        $region13: #{tpu_custom_call.1} parent=11 // pred_check
          %p276 = pneg %p37
        $region14: #{tpu_custom_call.1} parent=11 // pred_check_branch
          %278 = sbr.rel (%p276) target = $region16
        $region15: #{tpu_custom_call.1} parent=11 // pred_region
          _
        $region16: #{tpu_custom_call.1} parent=11 // pred_fallthru
          _
        // Predicated region
        $region17: #{tpu_custom_call.1} parent=11 // pred_check
          %p279 = pneg %p58
        $region18: #{tpu_custom_call.1} parent=11 // pred_check_branch
          %281 = sbr.rel (%p279) target = $region20
        $region19: #{tpu_custom_call.1} parent=11 // pred_region
          _
        $region20: #{tpu_custom_call.1} parent=11 // pred_fallthru
          _
      $region12: #{tpu_custom_call.1} parent=5 // pred_fallthru
        _
      %p282 = scmp.lt.s32.totalorder %s16, 2
      // Predicated region
      $region21: #{tpu_custom_call.1} parent=5 // pred_check
        %p283 = pneg %p282
      $region22: #{tpu_custom_call.1} parent=5 // pred_check_branch
        %285 = sbr.rel (%p283) target = $region24
      $region23: #{tpu_custom_call.1} parent=5 // pred_region
        // Predicated region
        $region25: #{tpu_custom_call.1} parent=23 // pred_check
          %p286 = pneg %p78
        $region26: #{tpu_custom_call.1} parent=23 // pred_check_branch
          %288 = sbr.rel (%p286) target = $region28
        $region27: #{tpu_custom_call.1} parent=23 // pred_region
          %p289 = scmp.lt.s32.totalorder %s16, 1
          %s290 = scalar_select %p289, %s16, 1
          %s291 = smul.addr %s290, 4
          %s292 = smul.addr %s291, 8
          %s293 = scalar_lea.vmem %s2, %s292
        $region28: #{tpu_custom_call.1} parent=23 // pred_fallthru
          _
        // Predicated region
        $region29: #{tpu_custom_call.1} parent=23 // pred_check
          %p294 = pneg %p104
        $region30: #{tpu_custom_call.1} parent=23 // pred_check_branch
          %296 = sbr.rel (%p294) target = $region32
        $region31: #{tpu_custom_call.1} parent=23 // pred_region
          %p297 = scmp.lt.s32.totalorder %s16, 1
          %s298 = scalar_select %p297, %s16, 1
          %s299 = scalar_lea.vmem %s3, %s298
        $region32: #{tpu_custom_call.1} parent=23 // pred_fallthru
          _
        // Predicated region
        $region33: #{tpu_custom_call.1} parent=23 // pred_check
          %p300 = pneg %p130
        $region34: #{tpu_custom_call.1} parent=23 // pred_check_branch
          %302 = sbr.rel (%p300) target = $region36
        $region35: #{tpu_custom_call.1} parent=23 // pred_region
          %p303 = scmp.lt.s32.totalorder %s16, 1
          %s304 = scalar_select %p303, %s16, 1
          %s305 = smul.addr %s304, 4
          %s306 = smul.addr %s305, 8
          %s307 = scalar_lea.vmem %s4, %s306
        $region36: #{tpu_custom_call.1} parent=23 // pred_fallthru
          _
        // Predicated region
        $region37: #{tpu_custom_call.1} parent=23 // pred_check
          %p308 = pneg %p156
        $region38: #{tpu_custom_call.1} parent=23 // pred_check_branch
          %310 = sbr.rel (%p308) target = $region40
        $region39: #{tpu_custom_call.1} parent=23 // pred_region
          %p311 = scmp.lt.s32.totalorder %s16, 1
          %s312 = scalar_select %p311, %s16, 1
          %s313 = smul.addr %s312, 4
          %s314 = smul.addr %s313, 8
          %s315 = scalar_lea.vmem %s5, %s314
        $region40: #{tpu_custom_call.1} parent=23 // pred_fallthru
          _
        // Predicated region
        $region41: #{tpu_custom_call.1} parent=23 // pred_check
          %p316 = pneg %p182
        $region42: #{tpu_custom_call.1} parent=23 // pred_check_branch
          %318 = sbr.rel (%p316) target = $region44
        $region43: #{tpu_custom_call.1} parent=23 // pred_region
          %p319 = scmp.lt.s32.totalorder %s16, 1
          %s320 = scalar_select %p319, %s16, 1
          %s321 = scalar_lea.vmem %s6, %s320
        $region44: #{tpu_custom_call.1} parent=23 // pred_fallthru
          _
        // Predicated region
        $region45: #{tpu_custom_call.1} parent=23 // pred_check
          %p322 = pneg %p208
        $region46: #{tpu_custom_call.1} parent=23 // pred_check_branch
          %324 = sbr.rel (%p322) target = $region48
        $region47: #{tpu_custom_call.1} parent=23 // pred_region
          %p325 = scmp.lt.s32.totalorder %s16, 1
          %s326 = scalar_select %p325, %s16, 1
          %s327 = smul.addr %s326, 8
          %s328 = smul.addr %s327, 8
          %s329 = scalar_lea.vmem %s7, %s328
        $region48: #{tpu_custom_call.1} parent=23 // pred_fallthru
          _
        // Predicated region
        $region49: #{tpu_custom_call.1} parent=23 // pred_check
          %p330 = pneg %p234
        $region50: #{tpu_custom_call.1} parent=23 // pred_check_branch
          %332 = sbr.rel (%p330) target = $region52
        $region51: #{tpu_custom_call.1} parent=23 // pred_region
          %p333 = scmp.lt.s32.totalorder %s16, 1
          %s334 = scalar_select %p333, %s16, 1
          %s335 = smul.addr %s334, 8
          %s336 = scalar_lea.vmem %s8, %s335
        $region52: #{tpu_custom_call.1} parent=23 // pred_fallthru
          _
      $region24: #{tpu_custom_call.1} parent=5 // pred_fallthru
        _
      %p337 = scmp.le.s32.totalorder 1, %s16
      %p338 = scmp.lt.s32.totalorder %s16, 3
      %p339 = pnand %p337, %p338
      %p340 = pneg %p339
      // Predicated region
      $region53: #{tpu_custom_call.1} parent=5 // pred_check
        _
      $region54: #{tpu_custom_call.1} parent=5 // pred_check_branch
        %342 = sbr.rel (%p339) target = $region56
      $region55: #{tpu_custom_call.1} parent=5 // pred_region
        %s343 = ssub.s32 %s16, 1
        %p344 = pneg %p37
        %p345 = pneg %p34
        %p346 = pneg %p58
        %p347 = pneg %p55
        %p348 = scmp.lt.s32.totalorder %s21, 1
        %s349 = scalar_select %p348, %s21, 1
        %s350 = smul.addr %s349, 4
        %s351 = smul.addr %s350, 8
        %s352 = scalar_lea.vmem %s2, %s351
        %p353 = pneg %p84
        %p354 = pneg %p81
        %p355 = scmp.lt.s32.totalorder %s21, 1
        %s356 = scalar_select %p355, %s21, 1
        %s357 = scalar_lea.vmem %s3, %s356
        %p358 = pneg %p110
        %p359 = pneg %p107
        %p360 = scmp.lt.s32.totalorder %s21, 1
        %s361 = scalar_select %p360, %s21, 1
        %s362 = smul.addr %s361, 4
        %s363 = smul.addr %s362, 8
        %s364 = scalar_lea.vmem %s4, %s363
        %p365 = pneg %p136
        %p366 = pneg %p133
        %p367 = scmp.lt.s32.totalorder %s21, 1
        %s368 = scalar_select %p367, %s21, 1
        %s369 = smul.addr %s368, 4
        %s370 = smul.addr %s369, 8
        %s371 = scalar_lea.vmem %s5, %s370
        %p372 = pneg %p162
        %p373 = pneg %p159
        %p374 = scmp.lt.s32.totalorder %s21, 1
        %s375 = scalar_select %p374, %s21, 1
        %s376 = scalar_lea.vmem %s6, %s375
        %p377 = pneg %p188
        %p378 = pneg %p185
        %p379 = scmp.lt.s32.totalorder %s21, 1
        %s380 = scalar_select %p379, %s21, 1
        %s381 = smul.addr %s380, 8
        %s382 = smul.addr %s381, 8
        %s383 = scalar_lea.vmem %s7, %s382
        %p384 = pneg %p214
        %p385 = pneg %p211
        %p386 = scmp.lt.s32.totalorder %s21, 1
        %s387 = scalar_select %p386, %s21, 1
        %s388 = smul.addr %s387, 8
        %s389 = scalar_lea.vmem %s8, %s388
        %p390 = pneg %p240
        %p391 = pneg %p237
        %p392 = pneg %p261
        %p393 = pneg %p258
        %p394 = scmp.lt.s32.totalorder %s21, 1
        %s395 = scalar_select %p394, %s21, 1
        %s396 = smul.addr %s395, 4
        %s397 = smul.addr %s396, 8
        %s398 = scalar_lea.vmem %s2, %s397
        %p399 = scmp.lt.s32.totalorder %s21, 1
        %s400 = scalar_select %p399, %s21, 1
        %s401 = scalar_lea.vmem %s3, %s400
        %p402 = scmp.lt.s32.totalorder %s21, 1
        %s403 = scalar_select %p402, %s21, 1
        %s404 = smul.addr %s403, 4
        %s405 = smul.addr %s404, 8
        %s406 = scalar_lea.vmem %s4, %s405
        %p407 = scmp.lt.s32.totalorder %s21, 1
        %s408 = scalar_select %p407, %s21, 1
        %s409 = smul.addr %s408, 4
        %s410 = smul.addr %s409, 8
        %s411 = scalar_lea.vmem %s5, %s410
        %p412 = scmp.lt.s32.totalorder %s21, 1
        %s413 = scalar_select %p412, %s21, 1
        %s414 = scalar_lea.vmem %s6, %s413
        %p415 = scmp.lt.s32.totalorder %s21, 1
        %s416 = scalar_select %p415, %s21, 1
        %s417 = smul.addr %s416, 8
        %s418 = smul.addr %s417, 8
        %s419 = scalar_lea.vmem %s7, %s418
        %p420 = scmp.lt.s32.totalorder %s21, 1
        %s421 = scalar_select %p420, %s21, 1
        %s422 = smul.addr %s421, 8
        %s423 = scalar_lea.vmem %s8, %s422
        %p424 = scmp.eq.s32.totalorder %s21, 0
        // Predicated region
        $region57: #{tpu_custom_call.1} parent=55 // pred_check
          %p425 = pneg %p424
        $region58: #{tpu_custom_call.1} parent=55 // pred_check_branch
          %427 = sbr.rel (%p425) target = $region60
        $region59: #{tpu_custom_call.1} parent=55 // pred_region
          %v428 = vld [vmem:[%s0] sm:$0xff]
          %v429 = vld [vmem:[%s0 + $0x8] sm:$0xff]
          %v430 = vld [vmem:[%s1] sm:$0xff]
          %v431 = vadd.f32 %v428, %v430
          %v432 = vadd.f32 %v429, %v430
          %vm433 = vcmask 261120
          %434 = vst.msk [vmem:[#allocation2] sm:$0xff] %vm433, %v431
          %435 = vst.msk [vmem:[#allocation2 + $0x8] sm:$0xff] %vm433, %v432
        $region60: #{tpu_custom_call.1} parent=55 // pred_fallthru
          _
        %v436 = vld [vmem:[#allocation2] sm:$0xff]
        %v437 = vld [vmem:[#allocation2 + $0x8] sm:$0xff]
        %v438 = vld [vmem:[%s423] sm:$0x3f]
        %v439 = vld [vmem:[%s401] sm:$0x1]
        %v440 = vld [vmem:[%s414] sm:$0x1]
        %v441 = vld [vmem:[%s398] sm:$0xff]
        %v442 = vld [vmem:[%s398 + $0x8] sm:$0xff]
        %v443 = vld [vmem:[%s398 + $0x10] sm:$0xff]
        %v444 = vld [vmem:[%s398 + $0x18] sm:$0xff]
        %v446 = vperm.slane %v439, 0
        %vm448 = vcmask 261120
        %v450 = vsel %vm448, %v436, 0
        %v453 = vsel %vm448, %v437, 0
        %455 = vmatpush.msra.mxu0 0.0
        %456 = vmatpush.msra.mxu0 0.0
        %457 = vmatpush.msra.mxu0 0.0
        %458 = vmatpush.msra.mxu0 0.0
        %459 = vmatpush.msra.mxu0 0.0
        %460 = vmatpush.msra.mxu0 0.0
        %461 = vmatpush.msra.mxu0 0.0
        %462 = vmatpush.msra.mxu0 0.0
        %463 = vmatpush.msra.mxu0 0.0
        %464 = vmatpush.msra.mxu0 0.0
        %465 = vmatpush.msra.mxu0 0.0
        %466 = vmatpush.msra.mxu0 0.0
        %467 = vmatpush.msra.mxu0 %v444
        %468 = vmatpush.msra.mxu0 %v443
        %469 = vmatpush.msra.mxu0 %v442
        %470 = vmatpush.msra.mxu0 %v441
        %471 = vmatmul.f32.gmra.mxu0 %v450
        %v472 = vpop.f32.mrf.mxu0
        %v473 = vadd.f32 %v446, %v472
        %474 = vmatmul.f32.gmra.mxu0 %v453
        %v475 = vpop.f32.mrf.mxu0
        %v476 = vadd.f32 %v446, %v475
        %477 = vdwg.mxu0
        %479 = vrot.lane.b32.xlu0 %v473, 96
        %v480 = vpop.permute.xlu0 %479
        %vm481 = vcmask 64512
        %v482 = vsel %vm481, %v473, 0
        %v484 = vsel %vm481, %v480, 0
        %486 = vmatpush.xpose.msra.mxu0 0.0
        %487 = vmatpush.xpose.msra.mxu0 0.0
        %488 = vmatpush.xpose.msra.mxu0 0.0
        %489 = vmatpush.xpose.msra.mxu0 0.0
        %490 = vmatpush.xpose.msra.mxu0 0.0
        %491 = vmatpush.xpose.msra.mxu0 0.0
        %492 = vmatpush.xpose.msra.mxu0 0.0
        %493 = vmatpush.xpose.msra.mxu0 0.0
        %494 = vmatpush.xpose.msra.mxu0 0.0
        %495 = vmatpush.xpose.msra.mxu0 0.0
        %496 = vmatpush.xpose.msra.mxu0 0.0
        %497 = vmatpush.xpose.msra.mxu0 0.0
        %498 = vmatpush.xpose.msra.mxu0 0.0
        %499 = vmatpush.xpose.msra.mxu0 0.0
        %500 = vmatpush.xpose.msra.mxu0 0.0
        %501 = vmatpush.xpose.msra.mxu0 %v484
        %502 = vmatmul.f32.gmra.mxu0 %v482
        %v503 = vpop.f32.mrf.mxu0
        %v504 = vadd.f32 0.0, %v503
        %505 = vdwg.mxu0
        %507 = vrot.lane.b32.xlu0 %v476, 96
        %v508 = vpop.permute.xlu0 %507
        %v509 = vsel %vm481, %v476, 0
        %v511 = vsel %vm481, %v508, 0
        %513 = vmatpush.xpose.msra.mxu0 0.0
        %514 = vmatpush.xpose.msra.mxu0 0.0
        %515 = vmatpush.xpose.msra.mxu0 0.0
        %516 = vmatpush.xpose.msra.mxu0 0.0
        %517 = vmatpush.xpose.msra.mxu0 0.0
        %518 = vmatpush.xpose.msra.mxu0 0.0
        %519 = vmatpush.xpose.msra.mxu0 0.0
        %520 = vmatpush.xpose.msra.mxu0 0.0
        %521 = vmatpush.xpose.msra.mxu0 0.0
        %522 = vmatpush.xpose.msra.mxu0 0.0
        %523 = vmatpush.xpose.msra.mxu0 0.0
        %524 = vmatpush.xpose.msra.mxu0 0.0
        %525 = vmatpush.xpose.msra.mxu0 0.0
        %526 = vmatpush.xpose.msra.mxu0 0.0
        %527 = vmatpush.xpose.msra.mxu0 0.0
        %528 = vmatpush.xpose.msra.mxu0 %v511
        %529 = vmatmul.f32.gmra.mxu0 %v509
        %v530 = vpop.f32.mrf.mxu0
        %v531 = vadd.f32 0.0, %v530
        %532 = vdwg.mxu0
        %v533 = vmul.f32 %v504, 0.35355338
        %v534 = vmul.f32 %v531, 0.35355338
        %v535 = vsel %vm481, %v533, -inf
        %536 = vmax.xlane.f32.xlu0 %v535
        %v537 = vpop.xlane.xlu0 %536
        %v538 = vsel %vm481, %v534, -inf
        %539 = vmax.xlane.f32.xlu0 %v538
        %v540 = vpop.xlane.xlu0 %539
        %v541 = vsub.f32 %v533, %v537
        %v542 = vsub.f32 %v534, %v540
        %v543 = vmul.f32 %v541, 1.442695
        %v544 = vpow.pop %v543
        %v545 = vmul.f32 %v542, 1.442695
        %v546 = vpow.pop %v545
        %v547 = vsel %vm481, %v544, 0.0
        %548 = vadd.xlane.f32.xlu0 %v547
        %v549 = vpop.xlane.xlu0 %548
        %v550 = vsel %vm481, %v546, 0.0
        %551 = vadd.xlane.f32.xlu0 %v550
        %v552 = vpop.xlane.xlu0 %551
        %v553 = vrcp.pop %v549
        %v554 = vrcp.pop %v552
        %v555 = vmul.f32 %v544, %v553
        %v556 = vmul.f32 %v546, %v554
        %557 = vrot.lane.b32.xlu0 %v473, 64
        %v558 = vpop.permute.xlu0 %557
        %v561 = vsel %vm481, %v555, 0
        %563 = vmatpush.msra.mxu0 0.0
        %564 = vmatpush.msra.mxu0 0.0
        %565 = vmatpush.msra.mxu0 0.0
        %566 = vmatpush.msra.mxu0 0.0
        %567 = vmatpush.msra.mxu0 0.0
        %568 = vmatpush.msra.mxu0 0.0
        %569 = vmatpush.msra.mxu0 0.0
        %570 = vmatpush.msra.mxu0 0.0
        %571 = vmatpush.msra.mxu0 0.0
        %572 = vmatpush.msra.mxu0 0.0
        %573 = vmatpush.msra.mxu0 0.0
        %574 = vmatpush.msra.mxu0 0.0
        %575 = vmatpush.msra.mxu0 0.0
        %576 = vmatpush.msra.mxu0 0.0
        %577 = vmatpush.msra.mxu0 0.0
        %578 = vmatpush.msra.mxu0 %v558
        %579 = vmatmul.f32.gmra.mxu0 %v561
        %v580 = vpop.f32.mrf.mxu0
        %v581 = vadd.f32 0.0, %v580
        %582 = vdwg.mxu0
        %583 = vrot.lane.b32.xlu0 %v476, 64
        %v584 = vpop.permute.xlu0 %583
        %v587 = vsel %vm481, %v556, 0
        %589 = vmatpush.msra.mxu0 0.0
        %590 = vmatpush.msra.mxu0 0.0
        %591 = vmatpush.msra.mxu0 0.0
        %592 = vmatpush.msra.mxu0 0.0
        %593 = vmatpush.msra.mxu0 0.0
        %594 = vmatpush.msra.mxu0 0.0
        %595 = vmatpush.msra.mxu0 0.0
        %596 = vmatpush.msra.mxu0 0.0
        %597 = vmatpush.msra.mxu0 0.0
        %598 = vmatpush.msra.mxu0 0.0
        %599 = vmatpush.msra.mxu0 0.0
        %600 = vmatpush.msra.mxu0 0.0
        %601 = vmatpush.msra.mxu0 0.0
        %602 = vmatpush.msra.mxu0 0.0
        %603 = vmatpush.msra.mxu0 0.0
        %604 = vmatpush.msra.mxu0 %v584
        %605 = vmatmul.f32.gmra.mxu0 %v587
        %v606 = vpop.f32.mrf.mxu0
        %v607 = vadd.f32 0.0, %v606
        %608 = vdwg.mxu0
        %609 = vrot.lane.b32.xlu0 %v473, 120
        %v610 = vpop.permute.xlu0 %609
        %611 = vrot.lane.b32.xlu0 %v473, 88
        %v612 = vpop.permute.xlu0 %611
        %v613 = vsel %vm481, %v610, 0
        %v615 = vsel %vm481, %v612, 0
        %617 = vmatpush.xpose.msra.mxu0 0.0
        %618 = vmatpush.xpose.msra.mxu0 0.0
        %619 = vmatpush.xpose.msra.mxu0 0.0
        %620 = vmatpush.xpose.msra.mxu0 0.0
        %621 = vmatpush.xpose.msra.mxu0 0.0
        %622 = vmatpush.xpose.msra.mxu0 0.0
        %623 = vmatpush.xpose.msra.mxu0 0.0
        %624 = vmatpush.xpose.msra.mxu0 0.0
        %625 = vmatpush.xpose.msra.mxu0 0.0
        %626 = vmatpush.xpose.msra.mxu0 0.0
        %627 = vmatpush.xpose.msra.mxu0 0.0
        %628 = vmatpush.xpose.msra.mxu0 0.0
        %629 = vmatpush.xpose.msra.mxu0 0.0
        %630 = vmatpush.xpose.msra.mxu0 0.0
        %631 = vmatpush.xpose.msra.mxu0 0.0
        %632 = vmatpush.xpose.msra.mxu0 %v615
        %633 = vmatmul.f32.gmra.mxu0 %v613
        %v634 = vpop.f32.mrf.mxu0
        %v635 = vadd.f32 0.0, %v634
        %636 = vdwg.mxu0
        %637 = vrot.lane.b32.xlu0 %v476, 120
        %v638 = vpop.permute.xlu0 %637
        %639 = vrot.lane.b32.xlu0 %v476, 88
        %v640 = vpop.permute.xlu0 %639
        %v641 = vsel %vm481, %v638, 0
        %v643 = vsel %vm481, %v640, 0
        %645 = vmatpush.xpose.msra.mxu0 0.0
        %646 = vmatpush.xpose.msra.mxu0 0.0
        %647 = vmatpush.xpose.msra.mxu0 0.0
        %648 = vmatpush.xpose.msra.mxu0 0.0
        %649 = vmatpush.xpose.msra.mxu0 0.0
        %650 = vmatpush.xpose.msra.mxu0 0.0
        %651 = vmatpush.xpose.msra.mxu0 0.0
        %652 = vmatpush.xpose.msra.mxu0 0.0
        %653 = vmatpush.xpose.msra.mxu0 0.0
        %654 = vmatpush.xpose.msra.mxu0 0.0
        %655 = vmatpush.xpose.msra.mxu0 0.0
        %656 = vmatpush.xpose.msra.mxu0 0.0
        %657 = vmatpush.xpose.msra.mxu0 0.0
        %658 = vmatpush.xpose.msra.mxu0 0.0
        %659 = vmatpush.xpose.msra.mxu0 0.0
        %660 = vmatpush.xpose.msra.mxu0 %v643
        %661 = vmatmul.f32.gmra.mxu0 %v641
        %v662 = vpop.f32.mrf.mxu0
        %v663 = vadd.f32 0.0, %v662
        %664 = vdwg.mxu0
        %v665 = vmul.f32 %v635, 0.35355338
        %v666 = vmul.f32 %v663, 0.35355338
        %v667 = vsel %vm481, %v665, -inf
        %668 = vmax.xlane.f32.xlu0 %v667
        %v669 = vpop.xlane.xlu0 %668
        %v670 = vsel %vm481, %v666, -inf
        %671 = vmax.xlane.f32.xlu0 %v670
        %v672 = vpop.xlane.xlu0 %671
        %v673 = vsub.f32 %v665, %v669
        %v674 = vsub.f32 %v666, %v672
        %v675 = vmul.f32 %v673, 1.442695
        %v676 = vpow.pop %v675
        %v677 = vmul.f32 %v674, 1.442695
        %v678 = vpow.pop %v677
        %v679 = vsel %vm481, %v676, 0.0
        %680 = vadd.xlane.f32.xlu0 %v679
        %v681 = vpop.xlane.xlu0 %680
        %v682 = vsel %vm481, %v678, 0.0
        %683 = vadd.xlane.f32.xlu0 %v682
        %v684 = vpop.xlane.xlu0 %683
        %v685 = vrcp.pop %v681
        %v686 = vrcp.pop %v684
        %v687 = vmul.f32 %v676, %v685
        %v688 = vmul.f32 %v678, %v686
        %689 = vrot.lane.b32.xlu0 %v473, 56
        %v690 = vpop.permute.xlu0 %689
        %v693 = vsel %vm481, %v687, 0
        %695 = vmatpush.msra.mxu0 0.0
        %696 = vmatpush.msra.mxu0 0.0
        %697 = vmatpush.msra.mxu0 0.0
        %698 = vmatpush.msra.mxu0 0.0
        %699 = vmatpush.msra.mxu0 0.0
        %700 = vmatpush.msra.mxu0 0.0
        %701 = vmatpush.msra.mxu0 0.0
        %702 = vmatpush.msra.mxu0 0.0
        %703 = vmatpush.msra.mxu0 0.0
        %704 = vmatpush.msra.mxu0 0.0
        %705 = vmatpush.msra.mxu0 0.0
        %706 = vmatpush.msra.mxu0 0.0
        %707 = vmatpush.msra.mxu0 0.0
        %708 = vmatpush.msra.mxu0 0.0
        %709 = vmatpush.msra.mxu0 0.0
        %710 = vmatpush.msra.mxu0 %v690
        %711 = vmatmul.f32.gmra.mxu0 %v693
        %v712 = vpop.f32.mrf.mxu0
        %v713 = vadd.f32 0.0, %v712
        %714 = vdwg.mxu0
        %715 = vrot.lane.b32.xlu0 %v476, 56
        %v716 = vpop.permute.xlu0 %715
        %v719 = vsel %vm481, %v688, 0
        %721 = vmatpush.msra.mxu0 0.0
        %722 = vmatpush.msra.mxu0 0.0
        %723 = vmatpush.msra.mxu0 0.0
        %724 = vmatpush.msra.mxu0 0.0
        %725 = vmatpush.msra.mxu0 0.0
        %726 = vmatpush.msra.mxu0 0.0
        %727 = vmatpush.msra.mxu0 0.0
        %728 = vmatpush.msra.mxu0 0.0
        %729 = vmatpush.msra.mxu0 0.0
        %730 = vmatpush.msra.mxu0 0.0
        %731 = vmatpush.msra.mxu0 0.0
        %732 = vmatpush.msra.mxu0 0.0
        %733 = vmatpush.msra.mxu0 0.0
        %734 = vmatpush.msra.mxu0 0.0
        %735 = vmatpush.msra.mxu0 0.0
        %736 = vmatpush.msra.mxu0 %v716
        %737 = vmatmul.f32.gmra.mxu0 %v719
        %v738 = vpop.f32.mrf.mxu0
        %v739 = vadd.f32 0.0, %v738
        %740 = vdwg.mxu0
        %741 = vrot.lane.b32.xlu0 %v473, 112
        %v742 = vpop.permute.xlu0 %741
        %743 = vrot.lane.b32.xlu0 %v473, 80
        %v744 = vpop.permute.xlu0 %743
        %v745 = vsel %vm481, %v742, 0
        %v747 = vsel %vm481, %v744, 0
        %749 = vmatpush.xpose.msra.mxu0 0.0
        %750 = vmatpush.xpose.msra.mxu0 0.0
        %751 = vmatpush.xpose.msra.mxu0 0.0
        %752 = vmatpush.xpose.msra.mxu0 0.0
        %753 = vmatpush.xpose.msra.mxu0 0.0
        %754 = vmatpush.xpose.msra.mxu0 0.0
        %755 = vmatpush.xpose.msra.mxu0 0.0
        %756 = vmatpush.xpose.msra.mxu0 0.0
        %757 = vmatpush.xpose.msra.mxu0 0.0
        %758 = vmatpush.xpose.msra.mxu0 0.0
        %759 = vmatpush.xpose.msra.mxu0 0.0
        %760 = vmatpush.xpose.msra.mxu0 0.0
        %761 = vmatpush.xpose.msra.mxu0 0.0
        %762 = vmatpush.xpose.msra.mxu0 0.0
        %763 = vmatpush.xpose.msra.mxu0 0.0
        %764 = vmatpush.xpose.msra.mxu0 %v747
        %765 = vmatmul.f32.gmra.mxu0 %v745
        %v766 = vpop.f32.mrf.mxu0
        %v767 = vadd.f32 0.0, %v766
        %768 = vdwg.mxu0
        %769 = vrot.lane.b32.xlu0 %v476, 112
        %v770 = vpop.permute.xlu0 %769
        %771 = vrot.lane.b32.xlu0 %v476, 80
        %v772 = vpop.permute.xlu0 %771
        %v773 = vsel %vm481, %v770, 0
        %v775 = vsel %vm481, %v772, 0
        %777 = vmatpush.xpose.msra.mxu0 0.0
        %778 = vmatpush.xpose.msra.mxu0 0.0
        %779 = vmatpush.xpose.msra.mxu0 0.0
        %780 = vmatpush.xpose.msra.mxu0 0.0
        %781 = vmatpush.xpose.msra.mxu0 0.0
        %782 = vmatpush.xpose.msra.mxu0 0.0
        %783 = vmatpush.xpose.msra.mxu0 0.0
        %784 = vmatpush.xpose.msra.mxu0 0.0
        %785 = vmatpush.xpose.msra.mxu0 0.0
        %786 = vmatpush.xpose.msra.mxu0 0.0
        %787 = vmatpush.xpose.msra.mxu0 0.0
        %788 = vmatpush.xpose.msra.mxu0 0.0
        %789 = vmatpush.xpose.msra.mxu0 0.0
        %790 = vmatpush.xpose.msra.mxu0 0.0
        %791 = vmatpush.xpose.msra.mxu0 0.0
        %792 = vmatpush.xpose.msra.mxu0 %v775
        %793 = vmatmul.f32.gmra.mxu0 %v773
        %v794 = vpop.f32.mrf.mxu0
        %v795 = vadd.f32 0.0, %v794
        %796 = vdwg.mxu0
        %v797 = vmul.f32 %v767, 0.35355338
        %v798 = vmul.f32 %v795, 0.35355338
        %v799 = vsel %vm481, %v797, -inf
        %800 = vmax.xlane.f32.xlu0 %v799
        %v801 = vpop.xlane.xlu0 %800
        %v802 = vsel %vm481, %v798, -inf
        %803 = vmax.xlane.f32.xlu0 %v802
        %v804 = vpop.xlane.xlu0 %803
        %v805 = vsub.f32 %v797, %v801
        %v806 = vsub.f32 %v798, %v804
        %v807 = vmul.f32 %v805, 1.442695
        %v808 = vpow.pop %v807
        %v809 = vmul.f32 %v806, 1.442695
        %v810 = vpow.pop %v809
        %v811 = vsel %vm481, %v808, 0.0
        %812 = vadd.xlane.f32.xlu0 %v811
        %v813 = vpop.xlane.xlu0 %812
        %v814 = vsel %vm481, %v810, 0.0
        %815 = vadd.xlane.f32.xlu0 %v814
        %v816 = vpop.xlane.xlu0 %815
        %v817 = vrcp.pop %v813
        %v818 = vrcp.pop %v816
        %v819 = vmul.f32 %v808, %v817
        %v820 = vmul.f32 %v810, %v818
        %821 = vrot.lane.b32.xlu0 %v473, 48
        %v822 = vpop.permute.xlu0 %821
        %v825 = vsel %vm481, %v819, 0
        %827 = vmatpush.msra.mxu0 0.0
        %828 = vmatpush.msra.mxu0 0.0
        %829 = vmatpush.msra.mxu0 0.0
        %830 = vmatpush.msra.mxu0 0.0
        %831 = vmatpush.msra.mxu0 0.0
        %832 = vmatpush.msra.mxu0 0.0
        %833 = vmatpush.msra.mxu0 0.0
        %834 = vmatpush.msra.mxu0 0.0
        %835 = vmatpush.msra.mxu0 0.0
        %836 = vmatpush.msra.mxu0 0.0
        %837 = vmatpush.msra.mxu0 0.0
        %838 = vmatpush.msra.mxu0 0.0
        %839 = vmatpush.msra.mxu0 0.0
        %840 = vmatpush.msra.mxu0 0.0
        %841 = vmatpush.msra.mxu0 0.0
        %842 = vmatpush.msra.mxu0 %v822
        %843 = vmatmul.f32.gmra.mxu0 %v825
        %v844 = vpop.f32.mrf.mxu0
        %v845 = vadd.f32 0.0, %v844
        %846 = vdwg.mxu0
        %847 = vrot.lane.b32.xlu0 %v476, 48
        %v848 = vpop.permute.xlu0 %847
        %v851 = vsel %vm481, %v820, 0
        %853 = vmatpush.msra.mxu0 0.0
        %854 = vmatpush.msra.mxu0 0.0
        %855 = vmatpush.msra.mxu0 0.0
        %856 = vmatpush.msra.mxu0 0.0
        %857 = vmatpush.msra.mxu0 0.0
        %858 = vmatpush.msra.mxu0 0.0
        %859 = vmatpush.msra.mxu0 0.0
        %860 = vmatpush.msra.mxu0 0.0
        %861 = vmatpush.msra.mxu0 0.0
        %862 = vmatpush.msra.mxu0 0.0
        %863 = vmatpush.msra.mxu0 0.0
        %864 = vmatpush.msra.mxu0 0.0
        %865 = vmatpush.msra.mxu0 0.0
        %866 = vmatpush.msra.mxu0 0.0
        %867 = vmatpush.msra.mxu0 0.0
        %868 = vmatpush.msra.mxu0 %v848
        %869 = vmatmul.f32.gmra.mxu0 %v851
        %v870 = vpop.f32.mrf.mxu0
        %v871 = vadd.f32 0.0, %v870
        %872 = vdwg.mxu0
        %873 = vrot.lane.b32.xlu0 %v473, 104
        %v874 = vpop.permute.xlu0 %873
        %875 = vrot.lane.b32.xlu0 %v473, 72
        %v876 = vpop.permute.xlu0 %875
        %v877 = vsel %vm481, %v874, 0
        %v879 = vsel %vm481, %v876, 0
        %881 = vmatpush.xpose.msra.mxu0 0.0
        %882 = vmatpush.xpose.msra.mxu0 0.0
        %883 = vmatpush.xpose.msra.mxu0 0.0
        %884 = vmatpush.xpose.msra.mxu0 0.0
        %885 = vmatpush.xpose.msra.mxu0 0.0
        %886 = vmatpush.xpose.msra.mxu0 0.0
        %887 = vmatpush.xpose.msra.mxu0 0.0
        %888 = vmatpush.xpose.msra.mxu0 0.0
        %889 = vmatpush.xpose.msra.mxu0 0.0
        %890 = vmatpush.xpose.msra.mxu0 0.0
        %891 = vmatpush.xpose.msra.mxu0 0.0
        %892 = vmatpush.xpose.msra.mxu0 0.0
        %893 = vmatpush.xpose.msra.mxu0 0.0
        %894 = vmatpush.xpose.msra.mxu0 0.0
        %895 = vmatpush.xpose.msra.mxu0 0.0
        %896 = vmatpush.xpose.msra.mxu0 %v879
        %897 = vmatmul.f32.gmra.mxu0 %v877
        %v898 = vpop.f32.mrf.mxu0
        %v899 = vadd.f32 0.0, %v898
        %900 = vdwg.mxu0
        %901 = vrot.lane.b32.xlu0 %v476, 104
        %v902 = vpop.permute.xlu0 %901
        %903 = vrot.lane.b32.xlu0 %v476, 72
        %v904 = vpop.permute.xlu0 %903
        %v905 = vsel %vm481, %v902, 0
        %v907 = vsel %vm481, %v904, 0
        %909 = vmatpush.xpose.msra.mxu0 0.0
        %910 = vmatpush.xpose.msra.mxu0 0.0
        %911 = vmatpush.xpose.msra.mxu0 0.0
        %912 = vmatpush.xpose.msra.mxu0 0.0
        %913 = vmatpush.xpose.msra.mxu0 0.0
        %914 = vmatpush.xpose.msra.mxu0 0.0
        %915 = vmatpush.xpose.msra.mxu0 0.0
        %916 = vmatpush.xpose.msra.mxu0 0.0
        %917 = vmatpush.xpose.msra.mxu0 0.0
        %918 = vmatpush.xpose.msra.mxu0 0.0
        %919 = vmatpush.xpose.msra.mxu0 0.0
        %920 = vmatpush.xpose.msra.mxu0 0.0
        %921 = vmatpush.xpose.msra.mxu0 0.0
        %922 = vmatpush.xpose.msra.mxu0 0.0
        %923 = vmatpush.xpose.msra.mxu0 0.0
        %924 = vmatpush.xpose.msra.mxu0 %v907
        %925 = vmatmul.f32.gmra.mxu0 %v905
        %v926 = vpop.f32.mrf.mxu0
        %v927 = vadd.f32 0.0, %v926
        %928 = vdwg.mxu0
        %v929 = vmul.f32 %v899, 0.35355338
        %v930 = vmul.f32 %v927, 0.35355338
        %v931 = vsel %vm481, %v929, -inf
        %932 = vmax.xlane.f32.xlu0 %v931
        %v933 = vpop.xlane.xlu0 %932
        %v934 = vsel %vm481, %v930, -inf
        %935 = vmax.xlane.f32.xlu0 %v934
        %v936 = vpop.xlane.xlu0 %935
        %v937 = vsub.f32 %v929, %v933
        %v938 = vsub.f32 %v930, %v936
        %v939 = vmul.f32 %v937, 1.442695
        %v940 = vpow.pop %v939
        %v941 = vmul.f32 %v938, 1.442695
        %v942 = vpow.pop %v941
        %v943 = vsel %vm481, %v940, 0.0
        %944 = vadd.xlane.f32.xlu0 %v943
        %v945 = vpop.xlane.xlu0 %944
        %v946 = vsel %vm481, %v942, 0.0
        %947 = vadd.xlane.f32.xlu0 %v946
        %v948 = vpop.xlane.xlu0 %947
        %v949 = vrcp.pop %v945
        %v950 = vrcp.pop %v948
        %v951 = vmul.f32 %v940, %v949
        %v952 = vmul.f32 %v942, %v950
        %953 = vrot.lane.b32.xlu0 %v473, 40
        %v954 = vpop.permute.xlu0 %953
        %v957 = vsel %vm481, %v951, 0
        %959 = vmatpush.msra.mxu0 0.0
        %960 = vmatpush.msra.mxu0 0.0
        %961 = vmatpush.msra.mxu0 0.0
        %962 = vmatpush.msra.mxu0 0.0
        %963 = vmatpush.msra.mxu0 0.0
        %964 = vmatpush.msra.mxu0 0.0
        %965 = vmatpush.msra.mxu0 0.0
        %966 = vmatpush.msra.mxu0 0.0
        %967 = vmatpush.msra.mxu0 0.0
        %968 = vmatpush.msra.mxu0 0.0
        %969 = vmatpush.msra.mxu0 0.0
        %970 = vmatpush.msra.mxu0 0.0
        %971 = vmatpush.msra.mxu0 0.0
        %972 = vmatpush.msra.mxu0 0.0
        %973 = vmatpush.msra.mxu0 0.0
        %974 = vmatpush.msra.mxu0 %v954
        %975 = vmatmul.f32.gmra.mxu0 %v957
        %v976 = vpop.f32.mrf.mxu0
        %v977 = vadd.f32 0.0, %v976
        %978 = vdwg.mxu0
        %979 = vrot.lane.b32.xlu0 %v476, 40
        %v980 = vpop.permute.xlu0 %979
        %v983 = vsel %vm481, %v952, 0
        %985 = vmatpush.msra.mxu0 0.0
        %986 = vmatpush.msra.mxu0 0.0
        %987 = vmatpush.msra.mxu0 0.0
        %988 = vmatpush.msra.mxu0 0.0
        %989 = vmatpush.msra.mxu0 0.0
        %990 = vmatpush.msra.mxu0 0.0
        %991 = vmatpush.msra.mxu0 0.0
        %992 = vmatpush.msra.mxu0 0.0
        %993 = vmatpush.msra.mxu0 0.0
        %994 = vmatpush.msra.mxu0 0.0
        %995 = vmatpush.msra.mxu0 0.0
        %996 = vmatpush.msra.mxu0 0.0
        %997 = vmatpush.msra.mxu0 0.0
        %998 = vmatpush.msra.mxu0 0.0
        %999 = vmatpush.msra.mxu0 0.0
        %1000 = vmatpush.msra.mxu0 %v980
        %1001 = vmatmul.f32.gmra.mxu0 %v983
        %v1002 = vpop.f32.mrf.mxu0
        %v1003 = vadd.f32 0.0, %v1002
        %1004 = vdwg.mxu0
        %1007 = vrot.lane.b32.xlu0 %v713, 8
        %v1008 = vpop.permute.xlu0 %1007
        %1009 = vrot.lane.b32.xlu0 %v739, 8
        %v1010 = vpop.permute.xlu0 %1009
        %1015 = vrot.lane.b32.xlu0 %v845, 16
        %v1016 = vpop.permute.xlu0 %1015
        %1017 = vrot.lane.b32.xlu0 %v871, 16
        %v1018 = vpop.permute.xlu0 %1017
        %1023 = vrot.lane.b32.xlu0 %v977, 24
        %v1024 = vpop.permute.xlu0 %1023
        %1025 = vrot.lane.b32.xlu0 %v1003, 24
        %v1026 = vpop.permute.xlu0 %1025
        %v1029 = vsel %vm481, %v581, %v1008
        %v1030 = vsel %vm481, %v607, %v1010
        %vm1031 = vcmask 130048
        %v1032 = vsel %vm1031, %v1029, %v1016
        %v1033 = vsel %vm1031, %v1030, %v1018
        %vm1034 = vcmask 195584
        %v1035 = vsel %vm1034, %v1032, %v1024
        %v1036 = vsel %vm1034, %v1033, %v1026
        %v1037 = vld [vmem:[%s406] sm:$0xff]
        %v1038 = vld [vmem:[%s406 + $0x8] sm:$0xff]
        %v1039 = vld [vmem:[%s406 + $0x10] sm:$0xff]
        %v1040 = vld [vmem:[%s406 + $0x18] sm:$0xff]
        %v1041 = vperm.slane %v438, 0
        %v1043 = vsel %vm448, %v1035, 0
        %v1046 = vsel %vm448, %v1036, 0
        %1048 = vmatpush.msra.mxu0 0.0
        %1049 = vmatpush.msra.mxu0 0.0
        %1050 = vmatpush.msra.mxu0 0.0
        %1051 = vmatpush.msra.mxu0 0.0
        %1052 = vmatpush.msra.mxu0 0.0
        %1053 = vmatpush.msra.mxu0 0.0
        %1054 = vmatpush.msra.mxu0 0.0
        %1055 = vmatpush.msra.mxu0 0.0
        %1056 = vmatpush.msra.mxu0 0.0
        %1057 = vmatpush.msra.mxu0 0.0
        %1058 = vmatpush.msra.mxu0 0.0
        %1059 = vmatpush.msra.mxu0 0.0
        %1060 = vmatpush.msra.mxu0 %v1040
        %1061 = vmatpush.msra.mxu0 %v1039
        %1062 = vmatpush.msra.mxu0 %v1038
        %1063 = vmatpush.msra.mxu0 %v1037
        %1064 = vmatmul.f32.gmra.mxu0 %v1043
        %v1065 = vpop.f32.mrf.mxu0
        %v1066 = vadd.f32 %v1041, %v1065
        %1067 = vmatmul.f32.gmra.mxu0 %v1046
        %v1068 = vpop.f32.mrf.mxu0
        %v1069 = vadd.f32 %v1041, %v1068
        %1070 = vdwg.mxu0
        %v1071 = vadd.f32 %v1066, %v436
        %v1072 = vadd.f32 %v1069, %v437
        %v1073 = vsel %vm448, %v1071, 0.0
        %1074 = vadd.xlane.f32.xlu0 %v1073
        %v1075 = vpop.xlane.xlu0 %1074
        %v1076 = vsel %vm448, %v1072, 0.0
        %1077 = vadd.xlane.f32.xlu0 %v1076
        %v1078 = vpop.xlane.xlu0 %1077
        %v1079 = vrcp.pop 32.0
        %v1080 = vmul.f32 32.0, %v1079
        %v1081 = vsub.f32 1.0, %v1080
        %v1082 = vmul.f32 %v1079, %v1081
        %v1083 = vadd.f32 %v1079, %v1082
        %vm1084 = vweird.f32 %v1079
        %v1085 = vsel %vm1084, %v1079, %v1083
        %v1086 = vmul.f32 %v1075, %v1085
        %v1087 = vmul.f32 %v1078, %v1085
        %v1088 = vsub.f32 %v1071, %v1086
        %v1089 = vsub.f32 %v1072, %v1087
        %v1090 = vmul.f32 %v1088, %v1088
        %v1091 = vmul.f32 %v1089, %v1089
        %v1092 = vsel %vm448, %v1090, 0.0
        %1093 = vadd.xlane.f32.xlu0 %v1092
        %v1094 = vpop.xlane.xlu0 %1093
        %v1095 = vsel %vm448, %v1091, 0.0
        %1096 = vadd.xlane.f32.xlu0 %v1095
        %v1097 = vpop.xlane.xlu0 %1096
        %v1098 = vmul.f32 %v1094, %v1085
        %v1099 = vmul.f32 %v1097, %v1085
        %v1100 = vadd.f32 %v1098, 1e-06
        %v1101 = vadd.f32 %v1099, 1e-06
        %v1102 = vrsqrt.pop %v1100
        %v1103 = vmul.f32 %v1102, %v1100
        %v1104 = vmul.f32 %v1103, %v1102
        %v1105 = vmul.f32 0.5, %v1104
        %v1106 = vsub.f32 1.5, %v1105
        %v1107 = vmul.f32 %v1102, %v1106
        %vm1108 = vweird.f32 %v1100
        %vm1109 = vweird.f32 %v1102
        %vm1110 = vmor %vm1108, %vm1109
        %v1111 = vsel %vm1110, %v1102, %v1107
        %v1112 = vrsqrt.pop %v1101
        %v1113 = vmul.f32 %v1112, %v1101
        %v1114 = vmul.f32 %v1113, %v1112
        %v1115 = vmul.f32 0.5, %v1114
        %v1116 = vsub.f32 1.5, %v1115
        %v1117 = vmul.f32 %v1112, %v1116
        %vm1118 = vweird.f32 %v1101
        %vm1119 = vweird.f32 %v1112
        %vm1120 = vmor %vm1118, %vm1119
        %v1121 = vsel %vm1120, %v1112, %v1117
        %v1122 = vmul.f32 %v1088, %v1111
        %v1123 = vmul.f32 %v1089, %v1121
        %v1124 = vperm.slane %v438, 1
        %v1125 = vmul.f32 %v1122, %v1124
        %v1126 = vmul.f32 %v1123, %v1124
        %v1127 = vperm.slane %v438, 2
        %v1128 = vadd.f32 %v1125, %v1127
        %v1129 = vadd.f32 %v1126, %v1127
        %v1130 = vld [vmem:[%s411] sm:$0xff]
        %v1131 = vld [vmem:[%s411 + $0x8] sm:$0xff]
        %v1132 = vld [vmem:[%s411 + $0x10] sm:$0xff]
        %v1133 = vld [vmem:[%s411 + $0x18] sm:$0xff]
        %v1135 = vperm.slane %v440, 0
        %v1138 = vsel %vm448, %v1128, 0
        %v1141 = vsel %vm448, %v1129, 0
        %1143 = vmatpush.msra.mxu0 0.0
        %1144 = vmatpush.msra.mxu0 0.0
        %1145 = vmatpush.msra.mxu0 0.0
        %1146 = vmatpush.msra.mxu0 0.0
        %1147 = vmatpush.msra.mxu0 0.0
        %1148 = vmatpush.msra.mxu0 0.0
        %1149 = vmatpush.msra.mxu0 0.0
        %1150 = vmatpush.msra.mxu0 0.0
        %1151 = vmatpush.msra.mxu0 0.0
        %1152 = vmatpush.msra.mxu0 0.0
        %1153 = vmatpush.msra.mxu0 0.0
        %1154 = vmatpush.msra.mxu0 0.0
        %1155 = vmatpush.msra.mxu0 %v1133
        %1156 = vmatpush.msra.mxu0 %v1132
        %1157 = vmatpush.msra.mxu0 %v1131
        %1158 = vmatpush.msra.mxu0 %v1130
        %1159 = vmatmul.f32.gmra.mxu0 %v1138
        %v1160 = vpop.f32.mrf.mxu0
        %v1161 = vadd.f32 %v1135, %v1160
        %1162 = vmatmul.f32.gmra.mxu0 %v1141
        %v1163 = vpop.f32.mrf.mxu0
        %v1164 = vadd.f32 %v1135, %v1163
        %1165 = vdwg.mxu0
        %v1166 = vmax.f32 %v1161, 0.0
        %v1167 = vmax.f32 %v1164, 0.0
        %v1168 = vld [vmem:[%s419] sm:$0xff]
        %v1169 = vld [vmem:[%s419 + $0x8] sm:$0xff]
        %v1170 = vld [vmem:[%s419 + $0x10] sm:$0xff]
        %v1171 = vld [vmem:[%s419 + $0x18] sm:$0xff]
        %v1172 = vld [vmem:[%s419 + $0x20] sm:$0xff]
        %v1173 = vld [vmem:[%s419 + $0x28] sm:$0xff]
        %v1174 = vld [vmem:[%s419 + $0x30] sm:$0xff]
        %v1175 = vld [vmem:[%s419 + $0x38] sm:$0xff]
        %v1176 = vperm.slane %v438, 3
        %vm1177 = vcmask 523264
        %v1179 = vsel %vm1177, %v1166, 0
        %v1182 = vsel %vm1177, %v1167, 0
        %1184 = vmatpush.msra.mxu0 0.0
        %1185 = vmatpush.msra.mxu0 0.0
        %1186 = vmatpush.msra.mxu0 0.0
        %1187 = vmatpush.msra.mxu0 0.0
        %1188 = vmatpush.msra.mxu0 0.0
        %1189 = vmatpush.msra.mxu0 0.0
        %1190 = vmatpush.msra.mxu0 0.0
        %1191 = vmatpush.msra.mxu0 0.0
        %1192 = vmatpush.msra.mxu0 %v1175
        %1193 = vmatpush.msra.mxu0 %v1174
        %1194 = vmatpush.msra.mxu0 %v1173
        %1195 = vmatpush.msra.mxu0 %v1172
        %1196 = vmatpush.msra.mxu0 %v1171
        %1197 = vmatpush.msra.mxu0 %v1170
        %1198 = vmatpush.msra.mxu0 %v1169
        %1199 = vmatpush.msra.mxu0 %v1168
        %1200 = vmatmul.f32.gmra.mxu0 %v1179
        %v1201 = vpop.f32.mrf.mxu0
        %v1202 = vadd.f32 %v1176, %v1201
        %1203 = vmatmul.f32.gmra.mxu0 %v1182
        %v1204 = vpop.f32.mrf.mxu0
        %v1205 = vadd.f32 %v1176, %v1204
        %1206 = vdwg.mxu0
        %v1207 = vadd.f32 %v1202, %v1128
        %v1208 = vadd.f32 %v1205, %v1129
        %v1209 = vsel %vm448, %v1207, 0.0
        %1210 = vadd.xlane.f32.xlu0 %v1209
        %v1211 = vpop.xlane.xlu0 %1210
        %v1212 = vsel %vm448, %v1208, 0.0
        %1213 = vadd.xlane.f32.xlu0 %v1212
        %v1214 = vpop.xlane.xlu0 %1213
        %v1215 = vmul.f32 %v1211, %v1085
        %v1216 = vmul.f32 %v1214, %v1085
        %v1217 = vsub.f32 %v1207, %v1215
        %v1218 = vsub.f32 %v1208, %v1216
        %v1219 = vmul.f32 %v1217, %v1217
        %v1220 = vmul.f32 %v1218, %v1218
        %v1221 = vsel %vm448, %v1219, 0.0
        %1222 = vadd.xlane.f32.xlu0 %v1221
        %v1223 = vpop.xlane.xlu0 %1222
        %v1224 = vsel %vm448, %v1220, 0.0
        %1225 = vadd.xlane.f32.xlu0 %v1224
        %v1226 = vpop.xlane.xlu0 %1225
        %v1227 = vmul.f32 %v1223, %v1085
        %v1228 = vmul.f32 %v1226, %v1085
        %v1229 = vadd.f32 %v1227, 1e-06
        %v1230 = vadd.f32 %v1228, 1e-06
        %v1231 = vrsqrt.pop %v1229
        %v1232 = vmul.f32 %v1231, %v1229
        %v1233 = vmul.f32 %v1232, %v1231
        %v1234 = vmul.f32 0.5, %v1233
        %v1235 = vsub.f32 1.5, %v1234
        %v1236 = vmul.f32 %v1231, %v1235
        %vm1237 = vweird.f32 %v1229
        %vm1238 = vweird.f32 %v1231
        %vm1239 = vmor %vm1237, %vm1238
        %v1240 = vsel %vm1239, %v1231, %v1236
        %v1241 = vrsqrt.pop %v1230
        %v1242 = vmul.f32 %v1241, %v1230
        %v1243 = vmul.f32 %v1242, %v1241
        %v1244 = vmul.f32 0.5, %v1243
        %v1245 = vsub.f32 1.5, %v1244
        %v1246 = vmul.f32 %v1241, %v1245
        %vm1247 = vweird.f32 %v1230
        %vm1248 = vweird.f32 %v1241
        %vm1249 = vmor %vm1247, %vm1248
        %v1250 = vsel %vm1249, %v1241, %v1246
        %v1251 = vmul.f32 %v1217, %v1240
        %v1252 = vmul.f32 %v1218, %v1250
        %v1253 = vperm.slane %v438, 4
        %v1254 = vmul.f32 %v1251, %v1253
        %v1255 = vmul.f32 %v1252, %v1253
        %v1256 = vperm.slane %v438, 5
        %v1257 = vadd.f32 %v1254, %v1256
        %v1258 = vadd.f32 %v1255, %v1256
        %1259 = vst.msk [vmem:[#allocation2] sm:$0xff] %vm448, %v1257
        %1260 = vst.msk [vmem:[#allocation2 + $0x8] sm:$0xff] %vm448, %v1258
        %p1261 = scmp.eq.s32.totalorder %s21, 1
        // Predicated region
        $region61: #{tpu_custom_call.1} parent=55 // pred_check
          %p1262 = pneg %p1261
        $region62: #{tpu_custom_call.1} parent=55 // pred_check_branch
          %1264 = sbr.rel (%p1262) target = $region64
        $region63: #{tpu_custom_call.1} parent=55 // pred_region
          %1265 = vst.msk [vmem:[#allocation3] sm:$0xff] %vm448, %v1257
          %1266 = vst.msk [vmem:[#allocation3 + $0x8] sm:$0xff] %vm448, %v1258
        $region64: #{tpu_custom_call.1} parent=55 // pred_fallthru
          _
        // Predicated region
        $region65: #{tpu_custom_call.1} parent=55 // pred_check
          %p1267 = pneg %p258
        $region66: #{tpu_custom_call.1} parent=55 // pred_check_branch
          %1269 = sbr.rel (%p1267) target = $region68
        $region67: #{tpu_custom_call.1} parent=55 // pred_region
          %1271 = vsyncadd [#allocation4], 0
          %s1272 = sshll.u32 [#allocation3], 4
          %s1273 = int_to_ptr.vmem [resolvable:$true] %s1272
          %s1274 = sshll.u32 %s9, 4
          %s1275 = int_to_ptr.hbm [resolvable:$true] %s1274
          %1280 = dma.vmem_to_hbm [thread:$0]  %s1273, 256, %s1275, [#allocation4], 128, 128, 8
        $region68: #{tpu_custom_call.1} parent=55 // pred_fallthru
          _
        // Predicated region
        $region69: #{tpu_custom_call.1} parent=55 // pred_check
          %p1281 = pneg %p258
        $region70: #{tpu_custom_call.1} parent=55 // pred_check_branch
          %1283 = sbr.rel (%p1281) target = $region72
        $region71: #{tpu_custom_call.1} parent=55 // pred_region
          %1285 = dma.done [#allocation4], 256
        $region72: #{tpu_custom_call.1} parent=55 // pred_fallthru
          _
      $region56: #{tpu_custom_call.1} parent=5 // pred_fallthru
        _
      %p1286 = scmp.le.s32.totalorder 2, %s16
      // Predicated region
      $region73: #{tpu_custom_call.1} parent=5 // pred_check
        %p1287 = pneg %p1286
      $region74: #{tpu_custom_call.1} parent=5 // pred_check_branch
        %1289 = sbr.rel (%p1287) target = $region76
      $region75: #{tpu_custom_call.1} parent=5 // pred_region
        %s1290 = ssub.s32 %s16, 2
      $region76: #{tpu_custom_call.1} parent=5 // pred_fallthru
        _
    $region6: #{tpu_custom_call.1} parent=1 // loop_footer
      %s20 = sadd.s32 1, %s16
    $region7: #{tpu_custom_call.1} parent=1 // loop_footer_branch
      %15 = sbr.rel target = $region3
    $region8: #{tpu_custom_call.1} parent=1 // loop_exit
      _
    %1291 = vsyncpa [#allocation4], 1
    %s1292 = scalar_lea.sflag [#allocation4], 1
    %1293 = vsyncpa %s1292, 1

</llo_original>
